<compile_context>
chip_gen: v5e
topology: v5e:2x2
jax: 0.10.0
libtpu: 0.0.40
codegen_flags: <defaults>
</compile_context>

<pallas_src>
import functools
import jax
import jax.numpy as jnp
from jax.experimental import pallas as pl
from jax.experimental.pallas import tpu as pltpu

# ---------------- config (small synthetic BERT) ----------------
VOCAB = 100
VOCAB_PAD = 128      # padded vocab rows (lane/MXU aligned one-hot contraction)
MAX_POS = 16
TYPE_VOCAB = 2
TYPE_PAD = 8
HIDDEN = 32
NUM_HEADS = 2
HEAD_DIM = HIDDEN // NUM_HEADS
INTER = 64
NUM_LAYERS = 2
QKV_COLS = 128       # 3*HIDDEN = 96, padded to a full 128-lane vreg
LN_EPS = 1e-12
BATCH = 2
SEQ = 8


# ---------------- in-kernel math helpers (values, not refs; all f32) ----------------
def _layer_norm(y, g, b):
    mu = jnp.mean(y, axis=-1, keepdims=True)
    d = y - mu
    var = jnp.mean(d * d, axis=-1, keepdims=True)
    return d * jax.lax.rsqrt(var + jnp.float32(LN_EPS)) * g + b


def _gelu_tanh(y):
    # TODO(synk): HF BERT uses erf-based GELU; swap in lax.erf if bit-exactness vs a checkpoint is required.
    c = jnp.float32(0.7978845608028654)
    return 0.5 * y * (1.0 + jnp.tanh(c * (y + 0.044715 * y * y * y)))


# ---------------- the fused whole-model kernel ----------------
def _model_kernel(ints_ref, emb_ref, vec_ref,
                  wqkv_ref, wo_ref, w1_ref, w2_ref,
                  out_ref, *, batch, seq):
    B, S, H, DH = batch, seq, HIDDEN, HEAD_DIM
    BS = B * S

    # ---- unpack int inputs (one stacked operand) ----
    ids = ints_ref[0]                                      # (B, S) int32
    tids = ints_ref[1]                                     # (B, S) int32
    amask = ints_ref[2].astype(jnp.float32)                # (B, S)

    # ---- embeddings ----
    # word: one-hot (128-row padded vocab) matmul gather.
    viota = jax.lax.broadcasted_iota(jnp.int32, (B, S, VOCAB_PAD), 2)
    onehot = (viota == ids[:, :, None]).astype(jnp.float32).reshape(BS, VOCAB_PAD)
    word = jnp.dot(onehot, emb_ref[0:VOCAB_PAD, :],
                   preferred_element_type=jnp.float32)     # (BS, H)

    # position: rows [VOCAB_PAD, VOCAB_PAD+S) of the slab, replicated over batch.
    pos = emb_ref[VOCAB_PAD:VOCAB_PAD + S, :]              # (S, H)
    pos = jnp.broadcast_to(pos[None], (B, S, H)).reshape(BS, H)

    # type embedding (vocab of 2): lane-wide VPU select, no MXU round trip.
    t0 = emb_ref[VOCAB_PAD + MAX_POS:VOCAB_PAD + MAX_POS + 1, :][None]      # (1,1,H)
    t1 = emb_ref[VOCAB_PAD + MAX_POS + 1:VOCAB_PAD + MAX_POS + 2, :][None]  # (1,1,H)
    typ = jnp.where(tids[:, :, None] == 0, t0, t1).reshape(BS, H)

    x = _layer_norm(word + pos + typ,
                    vec_ref[NUM_LAYERS, 0:1, 0:H],
                    vec_ref[NUM_LAYERS, 1:2, 0:H])         # (BS, H) f32

    # additive attention-mask bias, shared across layers & heads
    mask_bias = ((1.0 - amask) * jnp.float32(-10000.0))[:, None, :]   # (B, 1, S)
    scale = jnp.float32(1.0 / (HEAD_DIM ** 0.5))

    for l in range(NUM_LAYERS):                            # static unroll (2 layers)
        # fused QKV projection; output padded to a full 128-lane vreg
        qkv = jnp.dot(x.astype(jnp.bfloat16), wqkv_ref[l],
                      preferred_element_type=jnp.float32)  # (BS, 128) f32
        qkv = qkv + vec_ref[l, 0:1, :]                     # padded bias (1, 128)
        qkv3 = qkv.reshape(B, S, QKV_COLS).astype(jnp.bfloat16)   # layout-no-op reshape

        attn_out = jnp.zeros((BS, H), jnp.float32)
        for h in range(NUM_HEADS):                         # static head split (lane slices)
            q = qkv3[:, :, h * DH:(h + 1) * DH]                        # (B,S,dh) bf16
            k = qkv3[:, :, H + h * DH:H + (h + 1) * DH]
            v = qkv3[:, :, 2 * H + h * DH:2 * H + (h + 1) * DH]
            s = jax.lax.dot_general(q, k, (((2,), (2,)), ((0,), (0,))),
                                    preferred_element_type=jnp.float32)  # (B,S,S) f32
            s = s * scale + mask_bias
            s = s - jnp.max(s, axis=-1, keepdims=True)
            p = jnp.exp(s)
            p = p / jnp.sum(p, axis=-1, keepdims=True)     # exact normalization (f32)
            ctx = jax.lax.dot_general(p.astype(jnp.bfloat16), v,
                                      (((2,), (1,)), ((0,), (0,))),
                                      preferred_element_type=jnp.float32)  # (B,S,dh)
            # fold head h straight into the output projection (no lane concat)
            attn_out = attn_out + jnp.dot(
                ctx.reshape(BS, DH).astype(jnp.bfloat16), wo_ref[l, h],
                preferred_element_type=jnp.float32)        # (BS, H)

        attn_out = attn_out + vec_ref[l, 1:2, 0:H]
        y = _layer_norm(attn_out + x, vec_ref[l, 2:3, 0:H], vec_ref[l, 3:4, 0:H])

        hmid = jnp.dot(y.astype(jnp.bfloat16), w1_ref[l],
                       preferred_element_type=jnp.float32) + vec_ref[l, 4:5, 0:INTER]
        hmid = _gelu_tanh(hmid)
        ff = jnp.dot(hmid.astype(jnp.bfloat16), w2_ref[l],
                     preferred_element_type=jnp.float32) + vec_ref[l, 5:6, 0:H]
        x = _layer_norm(ff + y, vec_ref[l, 6:7, 0:H], vec_ref[l, 7:8, 0:H])

    # ---- CLS head (dropout p=0.1 is identity in eval mode) ----
    cls = x.reshape(B, S, H)[:, 0, :]                      # (B, H)
    cls_w = vec_ref[NUM_LAYERS, 2:3, 0:H]                  # (1, H)
    cls_b = vec_ref[NUM_LAYERS, 3:4, 0:1]                  # (1, 1)
    logits = jnp.sum(cls * cls_w, axis=-1, keepdims=True) + cls_b     # (B, 1)
    sig = 1.0 / (1.0 + jnp.exp(-logits))

    # single lane-dense output slab: [cls(32) | logit | sigmoid | zeros]
    out_ref[:, 0:H] = cls
    out_ref[:, H:H + 1] = logits
    out_ref[:, H + 1:H + 2] = sig
    out_ref[:, H + 2:] = jnp.zeros((B, 128 - H - 2), jnp.float32)


def _full_spec(shape):
    nd = len(shape)
    return pl.BlockSpec(shape, lambda i, _nd=nd: (0,) * _nd)


# ---------------- parameter init (deterministic, synthetic) ----------------
def init_params(key):
    def nrm(k, shape):
        return 0.02 * jax.random.normal(k, shape, dtype=jnp.float32)

    keys = iter(jax.random.split(key, 64))
    params = {
        "word_emb": nrm(next(keys), (VOCAB, HIDDEN)),
        "pos_emb": nrm(next(keys), (MAX_POS, HIDDEN)),
        "type_emb": nrm(next(keys), (TYPE_VOCAB, HIDDEN)),
        "emb_ln_g": jnp.ones((HIDDEN,), jnp.float32),
        "emb_ln_b": jnp.zeros((HIDDEN,), jnp.float32),
        "layers": [],
        "cls_w": nrm(next(keys), (HIDDEN, 1)),
        "cls_b": jnp.zeros((1,), jnp.float32),
    }
    for _ in range(NUM_LAYERS):
        layer = {
            "wq": nrm(next(keys), (HIDDEN, HIDDEN)), "bq": jnp.zeros((HIDDEN,), jnp.float32),
            "wk": nrm(next(keys), (HIDDEN, HIDDEN)), "bk": jnp.zeros((HIDDEN,), jnp.float32),
            "wv": nrm(next(keys), (HIDDEN, HIDDEN)), "bv": jnp.zeros((HIDDEN,), jnp.float32),
            "wo": nrm(next(keys), (HIDDEN, HIDDEN)), "bo": jnp.zeros((HIDDEN,), jnp.float32),
            "ln1_g": jnp.ones((HIDDEN,), jnp.float32), "ln1_b": jnp.zeros((HIDDEN,), jnp.float32),
            "w1": nrm(next(keys), (HIDDEN, INTER)), "b1": jnp.zeros((INTER,), jnp.float32),
            "w2": nrm(next(keys), (INTER, HIDDEN)), "b2": jnp.zeros((HIDDEN,), jnp.float32),
            "ln2_g": jnp.ones((HIDDEN,), jnp.float32), "ln2_b": jnp.zeros((HIDDEN,), jnp.float32),
        }
        params["layers"].append(layer)
    return params


# ---------------- one-time offline repack into 6 device operands ----------------
def pack_params(params):
    layers = params["layers"]
    L, H, I = NUM_LAYERS, HIDDEN, INTER

    # embedding slab: rows [word(128) | pos(16) | type(8)], H lanes, f32
    emb = jnp.zeros((VOCAB_PAD + MAX_POS + TYPE_PAD, H), jnp.float32)
    emb = emb.at[:VOCAB].set(params["word_emb"])
    emb = emb.at[VOCAB_PAD:VOCAB_PAD + MAX_POS].set(params["pos_emb"])
    emb = emb.at[VOCAB_PAD + MAX_POS:VOCAB_PAD + MAX_POS + TYPE_VOCAB].set(params["type_emb"])

    # vector slab: (L+1, 8, 128) f32 — per-layer rows: [bqkv | bo | ln1_g | ln1_b | b1 | b2 | ln2_g | ln2_b]
    # extra slab L: [emb_ln_g | emb_ln_b | cls_w | cls_b | zeros...]
    vec = jnp.zeros((L + 1, 8, 128), jnp.float32)
    for l, lyr in enumerate(layers):
        bqkv = jnp.concatenate([lyr["bq"], lyr["bk"], lyr["bv"]])    # (96,)
        vec = vec.at[l, 0, :3 * H].set(bqkv)
        vec = vec.at[l, 1, :H].set(lyr["bo"])
        vec = vec.at[l, 2, :H].set(lyr["ln1_g"])
        vec = vec.at[l, 3, :H].set(lyr["ln1_b"])
        vec = vec.at[l, 4, :I].set(lyr["b1"])
        vec = vec.at[l, 5, :H].set(lyr["b2"])
        vec = vec.at[l, 6, :H].set(lyr["ln2_g"])
        vec = vec.at[l, 7, :H].set(lyr["ln2_b"])
    vec = vec.at[L, 0, :H].set(params["emb_ln_g"])
    vec = vec.at[L, 1, :H].set(params["emb_ln_b"])
    vec = vec.at[L, 2, :H].set(params["cls_w"][:, 0])
    vec = vec.at[L, 3, 0].set(params["cls_b"][0])

    # matrix slabs (bf16, MXU-native on v6e/v7x; cast offline, once)
    wqkv = jnp.stack([
        jnp.pad(jnp.concatenate([l["wq"], l["wk"], l["wv"]], axis=1),
                ((0, 0), (0, QKV_COLS - 3 * H)))
        for l in layers]).astype(jnp.bfloat16)                        # (L, H, 128)
    wo = jnp.stack([l["wo"].reshape(NUM_HEADS, HEAD_DIM, H)
                    for l in layers]).astype(jnp.bfloat16)            # (L, nh, dh, H)
    w1 = jnp.stack([l["w1"] for l in layers]).astype(jnp.bfloat16)    # (L, H, I)
    w2 = jnp.stack([l["w2"] for l in layers]).astype(jnp.bfloat16)    # (L, I, H)

    return {"emb": emb, "vec": vec, "wqkv": wqkv, "wo": wo, "w1": w1, "w2": w2}


# ---------------- forward: one fused pallas_call ----------------
def binary_az_classifier_forward(packed, input_ids, attention_mask, token_type_ids):
    B, S = input_ids.shape
    ints = jnp.stack([input_ids.astype(jnp.int32),
                      token_type_ids.astype(jnp.int32),
                      attention_mask.astype(jnp.int32)])              # (3, B, S)

    inputs = [ints, packed["emb"], packed["vec"],
              packed["wqkv"], packed["wo"], packed["w1"], packed["w2"]]

    # Single lane-dense output slab (B, 128): [cls(32) | logit | sigmoid | pad].
    # NOTE(v7x): at realistic batch sizes add a leading "parallel" batch grid axis so
    # both TensorCores are used; at B=2 a single grid step is fastest.
    out = pl.pallas_call(
        functools.partial(_model_kernel, batch=B, seq=S),
        out_shape=jax.ShapeDtypeStruct((B, 128), jnp.float32),
        grid=(1,),
        in_specs=[_full_spec(x.shape) for x in inputs],
        out_specs=_full_spec((B, 128)),
        compiler_params=pltpu.CompilerParams(
            dimension_semantics=("arbitrary",),
        ),
    )(*inputs)

    encoded_cls = out[:, :HIDDEN]
    logits = out[:, HIDDEN:HIDDEN + 1]
    sigmoid_scores = out[:, HIDDEN + 1:HIDDEN + 2]
    return logits, sigmoid_scores, encoded_cls


# ---------------- main ----------------
if __name__ == "__main__":
    key = jax.random.PRNGKey(0)
    k_param, k_ids = jax.random.split(key)

    params = init_params(k_param)
    packed = pack_params(params)

    input_ids = jax.random.randint(k_ids, (BATCH, SEQ), 0, VOCAB, dtype=jnp.int32)
    token_type_ids = jnp.zeros((BATCH, SEQ), dtype=jnp.int32)
    attention_mask = jnp.ones((BATCH, SEQ), dtype=jnp.int32)
    attention_mask = attention_mask.at[1, -2:].set(0)   # simulate padding on sample 1

    fwd = jax.jit(lambda a, b, c: binary_az_classifier_forward(packed, a, b, c))
    logits, sigmoid_scores, encoded_cls = fwd(input_ids, attention_mask, token_type_ids)

    jax.block_until_ready((logits, sigmoid_scores, encoded_cls))
    assert logits.shape == (BATCH, 1)
    assert sigmoid_scores.shape == (BATCH, 1)
    assert encoded_cls.shape == (BATCH, HIDDEN)
    print("KERNEL_OK")
</pallas_src>

<mosaic_0001>
module attributes {stable_mosaic.version = 11 : i64} {
  func.func @_model_kernel(%arg0: i32, %arg1: memref<3x2x8xi32, #tpu.memory_space<vmem>>, %arg2: memref<152x32xf32, #tpu.memory_space<vmem>>, %arg3: memref<3x8x128xf32, #tpu.memory_space<vmem>>, %arg4: memref<2x32x128xbf16, #tpu.memory_space<vmem>>, %arg5: memref<2x2x16x32xbf16, #tpu.memory_space<vmem>>, %arg6: memref<2x32x64xbf16, #tpu.memory_space<vmem>>, %arg7: memref<2x64x32xbf16, #tpu.memory_space<vmem>>, %arg8: memref<2x128xf32, #tpu.memory_space<vmem>>) attributes {dimension_semantics = [#tpu.dimension_semantics<arbitrary>], iteration_bounds = array<i64: 1>, scalar_prefetch = 0 : i64, scratch_operands = 0 : i64, tpu.core_type = #tpu.core_type<tc>, window_params = [{pipeline_mode = #tpu.pipeline_mode<synchronous>, transform_indices = @transform_0, window_bounds = array<i64: 3, 2, 8>}, {pipeline_mode = #tpu.pipeline_mode<synchronous>, transform_indices = @transform_1, window_bounds = array<i64: 152, 32>}, {pipeline_mode = #tpu.pipeline_mode<synchronous>, transform_indices = @transform_2, window_bounds = array<i64: 3, 8, 128>}, {pipeline_mode = #tpu.pipeline_mode<synchronous>, transform_indices = @transform_3, window_bounds = array<i64: 2, 32, 128>}, {pipeline_mode = #tpu.pipeline_mode<synchronous>, transform_indices = @transform_4, window_bounds = array<i64: 2, 2, 16, 32>}, {pipeline_mode = #tpu.pipeline_mode<synchronous>, transform_indices = @transform_5, window_bounds = array<i64: 2, 32, 64>}, {pipeline_mode = #tpu.pipeline_mode<synchronous>, transform_indices = @transform_6, window_bounds = array<i64: 2, 64, 32>}, {pipeline_mode = #tpu.pipeline_mode<synchronous>, transform_indices = @transform_7, window_bounds = array<i64: 2, 128>}]} {
    %c0 = arith.constant 0 : index
    %c0_0 = arith.constant 0 : index
    %c0_1 = arith.constant 0 : index
    %0 = vector.load %arg1[%c0, %c0_0, %c0_1] : memref<3x2x8xi32, #tpu.memory_space<vmem>>, vector<1x2x8xi32>
    %1 = vector.shape_cast %0 : vector<1x2x8xi32> to vector<2x8xi32>
    %c1 = arith.constant 1 : index
    %c0_2 = arith.constant 0 : index
    %c0_3 = arith.constant 0 : index
    %2 = vector.load %arg1[%c1, %c0_2, %c0_3] : memref<3x2x8xi32, #tpu.memory_space<vmem>>, vector<1x2x8xi32>
    %3 = vector.shape_cast %2 : vector<1x2x8xi32> to vector<2x8xi32>
    %c2 = arith.constant 2 : index
    %c0_4 = arith.constant 0 : index
    %c0_5 = arith.constant 0 : index
    %4 = vector.load %arg1[%c2, %c0_4, %c0_5] : memref<3x2x8xi32, #tpu.memory_space<vmem>>, vector<1x2x8xi32>
    %5 = vector.shape_cast %4 : vector<1x2x8xi32> to vector<2x8xi32>
    %6 = arith.sitofp %5 : vector<2x8xi32> to vector<2x8xf32>
    %7 = tpu.iota {dimensions = array<i32: 2>} : vector<2x8x128xi32>
    %8 = vector.shape_cast %1 : vector<2x8xi32> to vector<2x8x1xi32>
    %9 = vector.broadcast %8 : vector<2x8x1xi32> to vector<2x8x128xi32>
    %10 = arith.cmpi eq, %7, %9 : vector<2x8x128xi32>
    %11 = arith.extui %10 : vector<2x8x128xi1> to vector<2x8x128xi32>
    %12 = arith.sitofp %11 : vector<2x8x128xi32> to vector<2x8x128xf32>
    %13 = vector.shape_cast %12 : vector<2x8x128xf32> to vector<16x128xf32>
    %c0_6 = arith.constant 0 : index
    %c0_7 = arith.constant 0 : index
    %14 = vector.load %arg2[%c0_6, %c0_7] : memref<152x32xf32, #tpu.memory_space<vmem>>, vector<128x32xf32>
    %cst = arith.constant dense<0.000000e+00> : vector<16x32xf32>
    %15 = tpu.matmul %13, %14, %cst {dimension_numbers = #tpu.dot_dimension_numbers<[1], [0], [0], [1], [0, 0, 1, 1], [], []>} : vector<16x128xf32>, vector<128x32xf32>, vector<16x32xf32> -> vector<16x32xf32>
    %c128 = arith.constant 128 : index
    %c0_8 = arith.constant 0 : index
    %16 = vector.load %arg2[%c128, %c0_8] : memref<152x32xf32, #tpu.memory_space<vmem>>, vector<8x32xf32>
    %17 = vector.shape_cast %16 : vector<8x32xf32> to vector<1x8x32xf32>
    %18 = vector.shape_cast %17 : vector<1x8x32xf32> to vector<1x8x32xf32>
    %19 = vector.broadcast %18 : vector<1x8x32xf32> to vector<2x8x32xf32>
    %20 = vector.shape_cast %19 : vector<2x8x32xf32> to vector<16x32xf32>
    %c144 = arith.constant 144 : index
    %c0_9 = arith.constant 0 : index
    %21 = vector.load %arg2[%c144, %c0_9] : memref<152x32xf32, #tpu.memory_space<vmem>>, vector<1x32xf32>
    %22 = vector.shape_cast %21 : vector<1x32xf32> to vector<1x1x32xf32>
    %c145 = arith.constant 145 : index
    %c0_10 = arith.constant 0 : index
    %23 = vector.load %arg2[%c145, %c0_10] : memref<152x32xf32, #tpu.memory_space<vmem>>, vector<1x32xf32>
    %24 = vector.shape_cast %23 : vector<1x32xf32> to vector<1x1x32xf32>
    %25 = vector.shape_cast %3 : vector<2x8xi32> to vector<2x8x1xi32>
    %c0_i32 = arith.constant 0 : i32
    %26 = vector.broadcast %c0_i32 : i32 to vector<2x8x1xi32>
    %27 = arith.cmpi eq, %25, %26 : vector<2x8x1xi32>
    %28 = vector.shape_cast %27 : vector<2x8x1xi1> to vector<2x8x1xi1>
    %29 = vector.broadcast %28 : vector<2x8x1xi1> to vector<2x8x32xi1>
    %30 = vector.shape_cast %22 : vector<1x1x32xf32> to vector<1x1x32xf32>
    %31 = vector.broadcast %30 : vector<1x1x32xf32> to vector<2x8x32xf32>
    %32 = vector.shape_cast %24 : vector<1x1x32xf32> to vector<1x1x32xf32>
    %33 = vector.broadcast %32 : vector<1x1x32xf32> to vector<2x8x32xf32>
    %34 = arith.select %29, %31, %33 : vector<2x8x32xi1>, vector<2x8x32xf32>
    %35 = vector.shape_cast %34 : vector<2x8x32xf32> to vector<16x32xf32>
    %36 = arith.addf %15, %20 : vector<16x32xf32>
    %37 = arith.addf %36, %35 : vector<16x32xf32>
    %c2_11 = arith.constant 2 : index
    %c0_12 = arith.constant 0 : index
    %c0_13 = arith.constant 0 : index
    %38 = vector.load %arg3[%c2_11, %c0_12, %c0_13] : memref<3x8x128xf32, #tpu.memory_space<vmem>>, vector<1x1x32xf32>
    %39 = vector.shape_cast %38 : vector<1x1x32xf32> to vector<1x32xf32>
    %c2_14 = arith.constant 2 : index
    %c1_15 = arith.constant 1 : index
    %c0_16 = arith.constant 0 : index
    %40 = vector.load %arg3[%c2_14, %c1_15, %c0_16] : memref<3x8x128xf32, #tpu.memory_space<vmem>>, vector<1x1x32xf32>
    %41 = vector.shape_cast %40 : vector<1x1x32xf32> to vector<1x32xf32>
    %cst_17 = arith.constant dense<0.000000e+00> : vector<16xf32>
    %42 = vector.multi_reduction <add>, %37, %cst_17 [1] : vector<16x32xf32> to vector<16xf32>
    %43 = vector.shape_cast %42 : vector<16xf32> to vector<16x1xf32>
    %cst_18 = arith.constant 3.200000e+01 : f32
    %44 = vector.broadcast %cst_18 : f32 to vector<16x1xf32>
    %45 = arith.divf %43, %44 : vector<16x1xf32>
    %46 = vector.broadcast %45 : vector<16x1xf32> to vector<16x32xf32>
    %47 = arith.subf %37, %46 : vector<16x32xf32>
    %48 = arith.mulf %47, %47 : vector<16x32xf32>
    %cst_19 = arith.constant dense<0.000000e+00> : vector<16xf32>
    %49 = vector.multi_reduction <add>, %48, %cst_19 [1] : vector<16x32xf32> to vector<16xf32>
    %50 = vector.shape_cast %49 : vector<16xf32> to vector<16x1xf32>
    %cst_20 = arith.constant 3.200000e+01 : f32
    %51 = vector.broadcast %cst_20 : f32 to vector<16x1xf32>
    %52 = arith.divf %50, %51 : vector<16x1xf32>
    %cst_21 = arith.constant 9.99999996E-13 : f32
    %53 = vector.broadcast %cst_21 : f32 to vector<16x1xf32>
    %54 = arith.addf %52, %53 : vector<16x1xf32>
    %55 = math.rsqrt %54 : vector<16x1xf32>
    %56 = vector.broadcast %55 : vector<16x1xf32> to vector<16x32xf32>
    %57 = arith.mulf %47, %56 : vector<16x32xf32>
    %58 = vector.broadcast %39 : vector<1x32xf32> to vector<16x32xf32>
    %59 = arith.mulf %57, %58 : vector<16x32xf32>
    %60 = vector.broadcast %41 : vector<1x32xf32> to vector<16x32xf32>
    %61 = arith.addf %59, %60 : vector<16x32xf32>
    %cst_22 = arith.constant 1.000000e+00 : f32
    %62 = vector.broadcast %cst_22 : f32 to vector<2x8xf32>
    %63 = arith.subf %62, %6 : vector<2x8xf32>
    %cst_23 = arith.constant -1.000000e+04 : f32
    %64 = vector.broadcast %cst_23 : f32 to vector<2x8xf32>
    %65 = arith.mulf %63, %64 : vector<2x8xf32>
    %66 = vector.shape_cast %65 : vector<2x8xf32> to vector<2x1x8xf32>
    %67 = arith.truncf %61 : vector<16x32xf32> to vector<16x32xbf16>
    %c0_24 = arith.constant 0 : index
    %c0_25 = arith.constant 0 : index
    %c0_26 = arith.constant 0 : index
    %68 = vector.load %arg4[%c0_24, %c0_25, %c0_26] : memref<2x32x128xbf16, #tpu.memory_space<vmem>>, vector<1x32x128xbf16>
    %69 = vector.shape_cast %68 : vector<1x32x128xbf16> to vector<32x128xbf16>
    %cst_27 = arith.constant dense<0.000000e+00> : vector<16x128xf32>
    %70 = tpu.matmul %67, %69, %cst_27 {dimension_numbers = #tpu.dot_dimension_numbers<[1], [0], [0], [1], [0, 0, 1, 1], [], []>} : vector<16x32xbf16>, vector<32x128xbf16>, vector<16x128xf32> -> vector<16x128xf32>
    %c0_28 = arith.constant 0 : index
    %c0_29 = arith.constant 0 : index
    %c0_30 = arith.constant 0 : index
    %71 = vector.load %arg3[%c0_28, %c0_29, %c0_30] : memref<3x8x128xf32, #tpu.memory_space<vmem>>, vector<1x1x128xf32>
    %72 = vector.shape_cast %71 : vector<1x1x128xf32> to vector<1x128xf32>
    %73 = vector.broadcast %72 : vector<1x128xf32> to vector<16x128xf32>
    %74 = arith.addf %70, %73 : vector<16x128xf32>
    %75 = vector.shape_cast %74 : vector<16x128xf32> to vector<2x8x128xf32>
    %76 = arith.truncf %75 : vector<2x8x128xf32> to vector<2x8x128xbf16>
    %cst_31 = arith.constant 0.000000e+00 : f32
    %77 = vector.broadcast %cst_31 : f32 to vector<16x32xf32>
    %78 = vector.extract_strided_slice %76 {offsets = [0, 0, 0], sizes = [2, 8, 16], strides = [1, 1, 1]} : vector<2x8x128xbf16> to vector<2x8x16xbf16>
    %79 = vector.extract_strided_slice %76 {offsets = [0, 0, 32], sizes = [2, 8, 16], strides = [1, 1, 1]} : vector<2x8x128xbf16> to vector<2x8x16xbf16>
    %80 = vector.extract_strided_slice %76 {offsets = [0, 0, 64], sizes = [2, 8, 16], strides = [1, 1, 1]} : vector<2x8x128xbf16> to vector<2x8x16xbf16>
    %cst_32 = arith.constant dense<0.000000e+00> : vector<2x8x8xf32>
    %81 = tpu.matmul %78, %79, %cst_32 {dimension_numbers = #tpu.dot_dimension_numbers<[2], [2], [1], [1], [0, 0, 0, 1, 1, 1], [0], [0]>} : vector<2x8x16xbf16>, vector<2x8x16xbf16>, vector<2x8x8xf32> -> vector<2x8x8xf32>
    %cst_33 = arith.constant 2.500000e-01 : f32
    %82 = vector.broadcast %cst_33 : f32 to vector<2x8x8xf32>
    %83 = arith.mulf %81, %82 : vector<2x8x8xf32>
    %84 = vector.broadcast %66 : vector<2x1x8xf32> to vector<2x8x8xf32>
    %85 = arith.addf %83, %84 : vector<2x8x8xf32>
    %cst_34 = arith.constant dense<0xFF800000> : vector<2x8xf32>
    %86 = vector.multi_reduction <maximumf>, %85, %cst_34 [2] : vector<2x8x8xf32> to vector<2x8xf32>
    %87 = vector.shape_cast %86 : vector<2x8xf32> to vector<2x8x1xf32>
    %88 = vector.broadcast %87 : vector<2x8x1xf32> to vector<2x8x8xf32>
    %89 = arith.subf %85, %88 : vector<2x8x8xf32>
    %90 = math.exp %89 : vector<2x8x8xf32>
    %cst_35 = arith.constant dense<0.000000e+00> : vector<2x8xf32>
    %91 = vector.multi_reduction <add>, %90, %cst_35 [2] : vector<2x8x8xf32> to vector<2x8xf32>
    %92 = vector.shape_cast %91 : vector<2x8xf32> to vector<2x8x1xf32>
    %93 = vector.broadcast %92 : vector<2x8x1xf32> to vector<2x8x8xf32>
    %94 = arith.divf %90, %93 : vector<2x8x8xf32>
    %95 = arith.truncf %94 : vector<2x8x8xf32> to vector<2x8x8xbf16>
    %cst_36 = arith.constant dense<0.000000e+00> : vector<2x8x16xf32>
    %96 = tpu.matmul %95, %80, %cst_36 {dimension_numbers = #tpu.dot_dimension_numbers<[2], [1], [1], [2], [0, 0, 0, 1, 1, 2], [0], [0]>} : vector<2x8x8xbf16>, vector<2x8x16xbf16>, vector<2x8x16xf32> -> vector<2x8x16xf32>
    %97 = vector.shape_cast %96 : vector<2x8x16xf32> to vector<16x16xf32>
    %98 = arith.truncf %97 : vector<16x16xf32> to vector<16x16xbf16>
    %c0_37 = arith.constant 0 : index
    %c0_38 = arith.constant 0 : index
    %c0_39 = arith.constant 0 : index
    %c0_40 = arith.constant 0 : index
    %99 = vector.load %arg5[%c0_37, %c0_38, %c0_39, %c0_40] : memref<2x2x16x32xbf16, #tpu.memory_space<vmem>>, vector<1x1x16x32xbf16>
    %100 = vector.shape_cast %99 : vector<1x1x16x32xbf16> to vector<16x32xbf16>
    %cst_41 = arith.constant dense<0.000000e+00> : vector<16x32xf32>
    %101 = tpu.matmul %98, %100, %cst_41 {dimension_numbers = #tpu.dot_dimension_numbers<[1], [0], [0], [1], [0, 0, 1, 1], [], []>} : vector<16x16xbf16>, vector<16x32xbf16>, vector<16x32xf32> -> vector<16x32xf32>
    %102 = arith.addf %77, %101 : vector<16x32xf32>
    %103 = vector.extract_strided_slice %76 {offsets = [0, 0, 16], sizes = [2, 8, 16], strides = [1, 1, 1]} : vector<2x8x128xbf16> to vector<2x8x16xbf16>
    %104 = vector.extract_strided_slice %76 {offsets = [0, 0, 48], sizes = [2, 8, 16], strides = [1, 1, 1]} : vector<2x8x128xbf16> to vector<2x8x16xbf16>
    %105 = vector.extract_strided_slice %76 {offsets = [0, 0, 80], sizes = [2, 8, 16], strides = [1, 1, 1]} : vector<2x8x128xbf16> to vector<2x8x16xbf16>
    %cst_42 = arith.constant dense<0.000000e+00> : vector<2x8x8xf32>
    %106 = tpu.matmul %103, %104, %cst_42 {dimension_numbers = #tpu.dot_dimension_numbers<[2], [2], [1], [1], [0, 0, 0, 1, 1, 1], [0], [0]>} : vector<2x8x16xbf16>, vector<2x8x16xbf16>, vector<2x8x8xf32> -> vector<2x8x8xf32>
    %cst_43 = arith.constant 2.500000e-01 : f32
    %107 = vector.broadcast %cst_43 : f32 to vector<2x8x8xf32>
    %108 = arith.mulf %106, %107 : vector<2x8x8xf32>
    %109 = vector.broadcast %66 : vector<2x1x8xf32> to vector<2x8x8xf32>
    %110 = arith.addf %108, %109 : vector<2x8x8xf32>
    %cst_44 = arith.constant dense<0xFF800000> : vector<2x8xf32>
    %111 = vector.multi_reduction <maximumf>, %110, %cst_44 [2] : vector<2x8x8xf32> to vector<2x8xf32>
    %112 = vector.shape_cast %111 : vector<2x8xf32> to vector<2x8x1xf32>
    %113 = vector.broadcast %112 : vector<2x8x1xf32> to vector<2x8x8xf32>
    %114 = arith.subf %110, %113 : vector<2x8x8xf32>
    %115 = math.exp %114 : vector<2x8x8xf32>
    %cst_45 = arith.constant dense<0.000000e+00> : vector<2x8xf32>
    %116 = vector.multi_reduction <add>, %115, %cst_45 [2] : vector<2x8x8xf32> to vector<2x8xf32>
    %117 = vector.shape_cast %116 : vector<2x8xf32> to vector<2x8x1xf32>
    %118 = vector.broadcast %117 : vector<2x8x1xf32> to vector<2x8x8xf32>
    %119 = arith.divf %115, %118 : vector<2x8x8xf32>
    %120 = arith.truncf %119 : vector<2x8x8xf32> to vector<2x8x8xbf16>
    %cst_46 = arith.constant dense<0.000000e+00> : vector<2x8x16xf32>
    %121 = tpu.matmul %120, %105, %cst_46 {dimension_numbers = #tpu.dot_dimension_numbers<[2], [1], [1], [2], [0, 0, 0, 1, 1, 2], [0], [0]>} : vector<2x8x8xbf16>, vector<2x8x16xbf16>, vector<2x8x16xf32> -> vector<2x8x16xf32>
    %122 = vector.shape_cast %121 : vector<2x8x16xf32> to vector<16x16xf32>
    %123 = arith.truncf %122 : vector<16x16xf32> to vector<16x16xbf16>
    %c0_47 = arith.constant 0 : index
    %c1_48 = arith.constant 1 : index
    %c0_49 = arith.constant 0 : index
    %c0_50 = arith.constant 0 : index
    %124 = vector.load %arg5[%c0_47, %c1_48, %c0_49, %c0_50] : memref<2x2x16x32xbf16, #tpu.memory_space<vmem>>, vector<1x1x16x32xbf16>
    %125 = vector.shape_cast %124 : vector<1x1x16x32xbf16> to vector<16x32xbf16>
    %cst_51 = arith.constant dense<0.000000e+00> : vector<16x32xf32>
    %126 = tpu.matmul %123, %125, %cst_51 {dimension_numbers = #tpu.dot_dimension_numbers<[1], [0], [0], [1], [0, 0, 1, 1], [], []>} : vector<16x16xbf16>, vector<16x32xbf16>, vector<16x32xf32> -> vector<16x32xf32>
    %127 = arith.addf %102, %126 : vector<16x32xf32>
    %c0_52 = arith.constant 0 : index
    %c1_53 = arith.constant 1 : index
    %c0_54 = arith.constant 0 : index
    %128 = vector.load %arg3[%c0_52, %c1_53, %c0_54] : memref<3x8x128xf32, #tpu.memory_space<vmem>>, vector<1x1x32xf32>
    %129 = vector.shape_cast %128 : vector<1x1x32xf32> to vector<1x32xf32>
    %130 = vector.broadcast %129 : vector<1x32xf32> to vector<16x32xf32>
    %131 = arith.addf %127, %130 : vector<16x32xf32>
    %132 = arith.addf %131, %61 : vector<16x32xf32>
    %c0_55 = arith.constant 0 : index
    %c2_56 = arith.constant 2 : index
    %c0_57 = arith.constant 0 : index
    %133 = vector.load %arg3[%c0_55, %c2_56, %c0_57] : memref<3x8x128xf32, #tpu.memory_space<vmem>>, vector<1x1x32xf32>
    %134 = vector.shape_cast %133 : vector<1x1x32xf32> to vector<1x32xf32>
    %c0_58 = arith.constant 0 : index
    %c3 = arith.constant 3 : index
    %c0_59 = arith.constant 0 : index
    %135 = vector.load %arg3[%c0_58, %c3, %c0_59] : memref<3x8x128xf32, #tpu.memory_space<vmem>>, vector<1x1x32xf32>
    %136 = vector.shape_cast %135 : vector<1x1x32xf32> to vector<1x32xf32>
    %cst_60 = arith.constant dense<0.000000e+00> : vector<16xf32>
    %137 = vector.multi_reduction <add>, %132, %cst_60 [1] : vector<16x32xf32> to vector<16xf32>
    %138 = vector.shape_cast %137 : vector<16xf32> to vector<16x1xf32>
    %cst_61 = arith.constant 3.200000e+01 : f32
    %139 = vector.broadcast %cst_61 : f32 to vector<16x1xf32>
    %140 = arith.divf %138, %139 : vector<16x1xf32>
    %141 = vector.broadcast %140 : vector<16x1xf32> to vector<16x32xf32>
    %142 = arith.subf %132, %141 : vector<16x32xf32>
    %143 = arith.mulf %142, %142 : vector<16x32xf32>
    %cst_62 = arith.constant dense<0.000000e+00> : vector<16xf32>
    %144 = vector.multi_reduction <add>, %143, %cst_62 [1] : vector<16x32xf32> to vector<16xf32>
    %145 = vector.shape_cast %144 : vector<16xf32> to vector<16x1xf32>
    %cst_63 = arith.constant 3.200000e+01 : f32
    %146 = vector.broadcast %cst_63 : f32 to vector<16x1xf32>
    %147 = arith.divf %145, %146 : vector<16x1xf32>
    %cst_64 = arith.constant 9.99999996E-13 : f32
    %148 = vector.broadcast %cst_64 : f32 to vector<16x1xf32>
    %149 = arith.addf %147, %148 : vector<16x1xf32>
    %150 = math.rsqrt %149 : vector<16x1xf32>
    %151 = vector.broadcast %150 : vector<16x1xf32> to vector<16x32xf32>
    %152 = arith.mulf %142, %151 : vector<16x32xf32>
    %153 = vector.broadcast %134 : vector<1x32xf32> to vector<16x32xf32>
    %154 = arith.mulf %152, %153 : vector<16x32xf32>
    %155 = vector.broadcast %136 : vector<1x32xf32> to vector<16x32xf32>
    %156 = arith.addf %154, %155 : vector<16x32xf32>
    %157 = arith.truncf %156 : vector<16x32xf32> to vector<16x32xbf16>
    %c0_65 = arith.constant 0 : index
    %c0_66 = arith.constant 0 : index
    %c0_67 = arith.constant 0 : index
    %158 = vector.load %arg6[%c0_65, %c0_66, %c0_67] : memref<2x32x64xbf16, #tpu.memory_space<vmem>>, vector<1x32x64xbf16>
    %159 = vector.shape_cast %158 : vector<1x32x64xbf16> to vector<32x64xbf16>
    %cst_68 = arith.constant dense<0.000000e+00> : vector<16x64xf32>
    %160 = tpu.matmul %157, %159, %cst_68 {dimension_numbers = #tpu.dot_dimension_numbers<[1], [0], [0], [1], [0, 0, 1, 1], [], []>} : vector<16x32xbf16>, vector<32x64xbf16>, vector<16x64xf32> -> vector<16x64xf32>
    %c0_69 = arith.constant 0 : index
    %c4 = arith.constant 4 : index
    %c0_70 = arith.constant 0 : index
    %161 = vector.load %arg3[%c0_69, %c4, %c0_70] : memref<3x8x128xf32, #tpu.memory_space<vmem>>, vector<1x1x64xf32>
    %162 = vector.shape_cast %161 : vector<1x1x64xf32> to vector<1x64xf32>
    %163 = vector.broadcast %162 : vector<1x64xf32> to vector<16x64xf32>
    %164 = arith.addf %160, %163 : vector<16x64xf32>
    %cst_71 = arith.constant 5.000000e-01 : f32
    %165 = vector.broadcast %cst_71 : f32 to vector<16x64xf32>
    %166 = arith.mulf %165, %164 : vector<16x64xf32>
    %cst_72 = arith.constant 4.471500e-02 : f32
    %167 = vector.broadcast %cst_72 : f32 to vector<16x64xf32>
    %168 = arith.mulf %167, %164 : vector<16x64xf32>
    %169 = arith.mulf %168, %164 : vector<16x64xf32>
    %170 = arith.mulf %169, %164 : vector<16x64xf32>
    %171 = arith.addf %164, %170 : vector<16x64xf32>
    %cst_73 = arith.constant 0.797884583 : f32
    %172 = vector.broadcast %cst_73 : f32 to vector<16x64xf32>
    %173 = arith.mulf %172, %171 : vector<16x64xf32>
    %174 = math.tanh %173 : vector<16x64xf32>
    %cst_74 = arith.constant 1.000000e+00 : f32
    %175 = vector.broadcast %cst_74 : f32 to vector<16x64xf32>
    %176 = arith.addf %175, %174 : vector<16x64xf32>
    %177 = arith.mulf %166, %176 : vector<16x64xf32>
    %178 = arith.truncf %177 : vector<16x64xf32> to vector<16x64xbf16>
    %c0_75 = arith.constant 0 : index
    %c0_76 = arith.constant 0 : index
    %c0_77 = arith.constant 0 : index
    %179 = vector.load %arg7[%c0_75, %c0_76, %c0_77] : memref<2x64x32xbf16, #tpu.memory_space<vmem>>, vector<1x64x32xbf16>
    %180 = vector.shape_cast %179 : vector<1x64x32xbf16> to vector<64x32xbf16>
    %cst_78 = arith.constant dense<0.000000e+00> : vector<16x32xf32>
    %181 = tpu.matmul %178, %180, %cst_78 {dimension_numbers = #tpu.dot_dimension_numbers<[1], [0], [0], [1], [0, 0, 1, 1], [], []>} : vector<16x64xbf16>, vector<64x32xbf16>, vector<16x32xf32> -> vector<16x32xf32>
    %c0_79 = arith.constant 0 : index
    %c5 = arith.constant 5 : index
    %c0_80 = arith.constant 0 : index
    %182 = vector.load %arg3[%c0_79, %c5, %c0_80] : memref<3x8x128xf32, #tpu.memory_space<vmem>>, vector<1x1x32xf32>
    %183 = vector.shape_cast %182 : vector<1x1x32xf32> to vector<1x32xf32>
    %184 = vector.broadcast %183 : vector<1x32xf32> to vector<16x32xf32>
    %185 = arith.addf %181, %184 : vector<16x32xf32>
    %186 = arith.addf %185, %156 : vector<16x32xf32>
    %c0_81 = arith.constant 0 : index
    %c6 = arith.constant 6 : index
    %c0_82 = arith.constant 0 : index
    %187 = vector.load %arg3[%c0_81, %c6, %c0_82] : memref<3x8x128xf32, #tpu.memory_space<vmem>>, vector<1x1x32xf32>
    %188 = vector.shape_cast %187 : vector<1x1x32xf32> to vector<1x32xf32>
    %c0_83 = arith.constant 0 : index
    %c7 = arith.constant 7 : index
    %c0_84 = arith.constant 0 : index
    %189 = vector.load %arg3[%c0_83, %c7, %c0_84] : memref<3x8x128xf32, #tpu.memory_space<vmem>>, vector<1x1x32xf32>
    %190 = vector.shape_cast %189 : vector<1x1x32xf32> to vector<1x32xf32>
    %cst_85 = arith.constant dense<0.000000e+00> : vector<16xf32>
    %191 = vector.multi_reduction <add>, %186, %cst_85 [1] : vector<16x32xf32> to vector<16xf32>
    %192 = vector.shape_cast %191 : vector<16xf32> to vector<16x1xf32>
    %cst_86 = arith.constant 3.200000e+01 : f32
    %193 = vector.broadcast %cst_86 : f32 to vector<16x1xf32>
    %194 = arith.divf %192, %193 : vector<16x1xf32>
    %195 = vector.broadcast %194 : vector<16x1xf32> to vector<16x32xf32>
    %196 = arith.subf %186, %195 : vector<16x32xf32>
    %197 = arith.mulf %196, %196 : vector<16x32xf32>
    %cst_87 = arith.constant dense<0.000000e+00> : vector<16xf32>
    %198 = vector.multi_reduction <add>, %197, %cst_87 [1] : vector<16x32xf32> to vector<16xf32>
    %199 = vector.shape_cast %198 : vector<16xf32> to vector<16x1xf32>
    %cst_88 = arith.constant 3.200000e+01 : f32
    %200 = vector.broadcast %cst_88 : f32 to vector<16x1xf32>
    %201 = arith.divf %199, %200 : vector<16x1xf32>
    %cst_89 = arith.constant 9.99999996E-13 : f32
    %202 = vector.broadcast %cst_89 : f32 to vector<16x1xf32>
    %203 = arith.addf %201, %202 : vector<16x1xf32>
    %204 = math.rsqrt %203 : vector<16x1xf32>
    %205 = vector.broadcast %204 : vector<16x1xf32> to vector<16x32xf32>
    %206 = arith.mulf %196, %205 : vector<16x32xf32>
    %207 = vector.broadcast %188 : vector<1x32xf32> to vector<16x32xf32>
    %208 = arith.mulf %206, %207 : vector<16x32xf32>
    %209 = vector.broadcast %190 : vector<1x32xf32> to vector<16x32xf32>
    %210 = arith.addf %208, %209 : vector<16x32xf32>
    %211 = arith.truncf %210 : vector<16x32xf32> to vector<16x32xbf16>
    %c1_90 = arith.constant 1 : index
    %c0_91 = arith.constant 0 : index
    %c0_92 = arith.constant 0 : index
    %212 = vector.load %arg4[%c1_90, %c0_91, %c0_92] : memref<2x32x128xbf16, #tpu.memory_space<vmem>>, vector<1x32x128xbf16>
    %213 = vector.shape_cast %212 : vector<1x32x128xbf16> to vector<32x128xbf16>
    %cst_93 = arith.constant dense<0.000000e+00> : vector<16x128xf32>
    %214 = tpu.matmul %211, %213, %cst_93 {dimension_numbers = #tpu.dot_dimension_numbers<[1], [0], [0], [1], [0, 0, 1, 1], [], []>} : vector<16x32xbf16>, vector<32x128xbf16>, vector<16x128xf32> -> vector<16x128xf32>
    %c1_94 = arith.constant 1 : index
    %c0_95 = arith.constant 0 : index
    %c0_96 = arith.constant 0 : index
    %215 = vector.load %arg3[%c1_94, %c0_95, %c0_96] : memref<3x8x128xf32, #tpu.memory_space<vmem>>, vector<1x1x128xf32>
    %216 = vector.shape_cast %215 : vector<1x1x128xf32> to vector<1x128xf32>
    %217 = vector.broadcast %216 : vector<1x128xf32> to vector<16x128xf32>
    %218 = arith.addf %214, %217 : vector<16x128xf32>
    %219 = vector.shape_cast %218 : vector<16x128xf32> to vector<2x8x128xf32>
    %220 = arith.truncf %219 : vector<2x8x128xf32> to vector<2x8x128xbf16>
    %cst_97 = arith.constant 0.000000e+00 : f32
    %221 = vector.broadcast %cst_97 : f32 to vector<16x32xf32>
    %222 = vector.extract_strided_slice %220 {offsets = [0, 0, 0], sizes = [2, 8, 16], strides = [1, 1, 1]} : vector<2x8x128xbf16> to vector<2x8x16xbf16>
    %223 = vector.extract_strided_slice %220 {offsets = [0, 0, 32], sizes = [2, 8, 16], strides = [1, 1, 1]} : vector<2x8x128xbf16> to vector<2x8x16xbf16>
    %224 = vector.extract_strided_slice %220 {offsets = [0, 0, 64], sizes = [2, 8, 16], strides = [1, 1, 1]} : vector<2x8x128xbf16> to vector<2x8x16xbf16>
    %cst_98 = arith.constant dense<0.000000e+00> : vector<2x8x8xf32>
    %225 = tpu.matmul %222, %223, %cst_98 {dimension_numbers = #tpu.dot_dimension_numbers<[2], [2], [1], [1], [0, 0, 0, 1, 1, 1], [0], [0]>} : vector<2x8x16xbf16>, vector<2x8x16xbf16>, vector<2x8x8xf32> -> vector<2x8x8xf32>
    %cst_99 = arith.constant 2.500000e-01 : f32
    %226 = vector.broadcast %cst_99 : f32 to vector<2x8x8xf32>
    %227 = arith.mulf %225, %226 : vector<2x8x8xf32>
    %228 = vector.broadcast %66 : vector<2x1x8xf32> to vector<2x8x8xf32>
    %229 = arith.addf %227, %228 : vector<2x8x8xf32>
    %cst_100 = arith.constant dense<0xFF800000> : vector<2x8xf32>
    %230 = vector.multi_reduction <maximumf>, %229, %cst_100 [2] : vector<2x8x8xf32> to vector<2x8xf32>
    %231 = vector.shape_cast %230 : vector<2x8xf32> to vector<2x8x1xf32>
    %232 = vector.broadcast %231 : vector<2x8x1xf32> to vector<2x8x8xf32>
    %233 = arith.subf %229, %232 : vector<2x8x8xf32>
    %234 = math.exp %233 : vector<2x8x8xf32>
    %cst_101 = arith.constant dense<0.000000e+00> : vector<2x8xf32>
    %235 = vector.multi_reduction <add>, %234, %cst_101 [2] : vector<2x8x8xf32> to vector<2x8xf32>
    %236 = vector.shape_cast %235 : vector<2x8xf32> to vector<2x8x1xf32>
    %237 = vector.broadcast %236 : vector<2x8x1xf32> to vector<2x8x8xf32>
    %238 = arith.divf %234, %237 : vector<2x8x8xf32>
    %239 = arith.truncf %238 : vector<2x8x8xf32> to vector<2x8x8xbf16>
    %cst_102 = arith.constant dense<0.000000e+00> : vector<2x8x16xf32>
    %240 = tpu.matmul %239, %224, %cst_102 {dimension_numbers = #tpu.dot_dimension_numbers<[2], [1], [1], [2], [0, 0, 0, 1, 1, 2], [0], [0]>} : vector<2x8x8xbf16>, vector<2x8x16xbf16>, vector<2x8x16xf32> -> vector<2x8x16xf32>
    %241 = vector.shape_cast %240 : vector<2x8x16xf32> to vector<16x16xf32>
    %242 = arith.truncf %241 : vector<16x16xf32> to vector<16x16xbf16>
    %c1_103 = arith.constant 1 : index
    %c0_104 = arith.constant 0 : index
    %c0_105 = arith.constant 0 : index
    %c0_106 = arith.constant 0 : index
    %243 = vector.load %arg5[%c1_103, %c0_104, %c0_105, %c0_106] : memref<2x2x16x32xbf16, #tpu.memory_space<vmem>>, vector<1x1x16x32xbf16>
    %244 = vector.shape_cast %243 : vector<1x1x16x32xbf16> to vector<16x32xbf16>
    %cst_107 = arith.constant dense<0.000000e+00> : vector<16x32xf32>
    %245 = tpu.matmul %242, %244, %cst_107 {dimension_numbers = #tpu.dot_dimension_numbers<[1], [0], [0], [1], [0, 0, 1, 1], [], []>} : vector<16x16xbf16>, vector<16x32xbf16>, vector<16x32xf32> -> vector<16x32xf32>
    %246 = arith.addf %221, %245 : vector<16x32xf32>
    %247 = vector.extract_strided_slice %220 {offsets = [0, 0, 16], sizes = [2, 8, 16], strides = [1, 1, 1]} : vector<2x8x128xbf16> to vector<2x8x16xbf16>
    %248 = vector.extract_strided_slice %220 {offsets = [0, 0, 48], sizes = [2, 8, 16], strides = [1, 1, 1]} : vector<2x8x128xbf16> to vector<2x8x16xbf16>
    %249 = vector.extract_strided_slice %220 {offsets = [0, 0, 80], sizes = [2, 8, 16], strides = [1, 1, 1]} : vector<2x8x128xbf16> to vector<2x8x16xbf16>
    %cst_108 = arith.constant dense<0.000000e+00> : vector<2x8x8xf32>
    %250 = tpu.matmul %247, %248, %cst_108 {dimension_numbers = #tpu.dot_dimension_numbers<[2], [2], [1], [1], [0, 0, 0, 1, 1, 1], [0], [0]>} : vector<2x8x16xbf16>, vector<2x8x16xbf16>, vector<2x8x8xf32> -> vector<2x8x8xf32>
    %cst_109 = arith.constant 2.500000e-01 : f32
    %251 = vector.broadcast %cst_109 : f32 to vector<2x8x8xf32>
    %252 = arith.mulf %250, %251 : vector<2x8x8xf32>
    %253 = vector.broadcast %66 : vector<2x1x8xf32> to vector<2x8x8xf32>
    %254 = arith.addf %252, %253 : vector<2x8x8xf32>
    %cst_110 = arith.constant dense<0xFF800000> : vector<2x8xf32>
    %255 = vector.multi_reduction <maximumf>, %254, %cst_110 [2] : vector<2x8x8xf32> to vector<2x8xf32>
    %256 = vector.shape_cast %255 : vector<2x8xf32> to vector<2x8x1xf32>
    %257 = vector.broadcast %256 : vector<2x8x1xf32> to vector<2x8x8xf32>
    %258 = arith.subf %254, %257 : vector<2x8x8xf32>
    %259 = math.exp %258 : vector<2x8x8xf32>
    %cst_111 = arith.constant dense<0.000000e+00> : vector<2x8xf32>
    %260 = vector.multi_reduction <add>, %259, %cst_111 [2] : vector<2x8x8xf32> to vector<2x8xf32>
    %261 = vector.shape_cast %260 : vector<2x8xf32> to vector<2x8x1xf32>
    %262 = vector.broadcast %261 : vector<2x8x1xf32> to vector<2x8x8xf32>
    %263 = arith.divf %259, %262 : vector<2x8x8xf32>
    %264 = arith.truncf %263 : vector<2x8x8xf32> to vector<2x8x8xbf16>
    %cst_112 = arith.constant dense<0.000000e+00> : vector<2x8x16xf32>
    %265 = tpu.matmul %264, %249, %cst_112 {dimension_numbers = #tpu.dot_dimension_numbers<[2], [1], [1], [2], [0, 0, 0, 1, 1, 2], [0], [0]>} : vector<2x8x8xbf16>, vector<2x8x16xbf16>, vector<2x8x16xf32> -> vector<2x8x16xf32>
    %266 = vector.shape_cast %265 : vector<2x8x16xf32> to vector<16x16xf32>
    %267 = arith.truncf %266 : vector<16x16xf32> to vector<16x16xbf16>
    %c1_113 = arith.constant 1 : index
    %c1_114 = arith.constant 1 : index
    %c0_115 = arith.constant 0 : index
    %c0_116 = arith.constant 0 : index
    %268 = vector.load %arg5[%c1_113, %c1_114, %c0_115, %c0_116] : memref<2x2x16x32xbf16, #tpu.memory_space<vmem>>, vector<1x1x16x32xbf16>
    %269 = vector.shape_cast %268 : vector<1x1x16x32xbf16> to vector<16x32xbf16>
    %cst_117 = arith.constant dense<0.000000e+00> : vector<16x32xf32>
    %270 = tpu.matmul %267, %269, %cst_117 {dimension_numbers = #tpu.dot_dimension_numbers<[1], [0], [0], [1], [0, 0, 1, 1], [], []>} : vector<16x16xbf16>, vector<16x32xbf16>, vector<16x32xf32> -> vector<16x32xf32>
    %271 = arith.addf %246, %270 : vector<16x32xf32>
    %c1_118 = arith.constant 1 : index
    %c1_119 = arith.constant 1 : index
    %c0_120 = arith.constant 0 : index
    %272 = vector.load %arg3[%c1_118, %c1_119, %c0_120] : memref<3x8x128xf32, #tpu.memory_space<vmem>>, vector<1x1x32xf32>
    %273 = vector.shape_cast %272 : vector<1x1x32xf32> to vector<1x32xf32>
    %274 = vector.broadcast %273 : vector<1x32xf32> to vector<16x32xf32>
    %275 = arith.addf %271, %274 : vector<16x32xf32>
    %276 = arith.addf %275, %210 : vector<16x32xf32>
    %c1_121 = arith.constant 1 : index
    %c2_122 = arith.constant 2 : index
    %c0_123 = arith.constant 0 : index
    %277 = vector.load %arg3[%c1_121, %c2_122, %c0_123] : memref<3x8x128xf32, #tpu.memory_space<vmem>>, vector<1x1x32xf32>
    %278 = vector.shape_cast %277 : vector<1x1x32xf32> to vector<1x32xf32>
    %c1_124 = arith.constant 1 : index
    %c3_125 = arith.constant 3 : index
    %c0_126 = arith.constant 0 : index
    %279 = vector.load %arg3[%c1_124, %c3_125, %c0_126] : memref<3x8x128xf32, #tpu.memory_space<vmem>>, vector<1x1x32xf32>
    %280 = vector.shape_cast %279 : vector<1x1x32xf32> to vector<1x32xf32>
    %cst_127 = arith.constant dense<0.000000e+00> : vector<16xf32>
    %281 = vector.multi_reduction <add>, %276, %cst_127 [1] : vector<16x32xf32> to vector<16xf32>
    %282 = vector.shape_cast %281 : vector<16xf32> to vector<16x1xf32>
    %cst_128 = arith.constant 3.200000e+01 : f32
    %283 = vector.broadcast %cst_128 : f32 to vector<16x1xf32>
    %284 = arith.divf %282, %283 : vector<16x1xf32>
    %285 = vector.broadcast %284 : vector<16x1xf32> to vector<16x32xf32>
    %286 = arith.subf %276, %285 : vector<16x32xf32>
    %287 = arith.mulf %286, %286 : vector<16x32xf32>
    %cst_129 = arith.constant dense<0.000000e+00> : vector<16xf32>
    %288 = vector.multi_reduction <add>, %287, %cst_129 [1] : vector<16x32xf32> to vector<16xf32>
    %289 = vector.shape_cast %288 : vector<16xf32> to vector<16x1xf32>
    %cst_130 = arith.constant 3.200000e+01 : f32
    %290 = vector.broadcast %cst_130 : f32 to vector<16x1xf32>
    %291 = arith.divf %289, %290 : vector<16x1xf32>
    %cst_131 = arith.constant 9.99999996E-13 : f32
    %292 = vector.broadcast %cst_131 : f32 to vector<16x1xf32>
    %293 = arith.addf %291, %292 : vector<16x1xf32>
    %294 = math.rsqrt %293 : vector<16x1xf32>
    %295 = vector.broadcast %294 : vector<16x1xf32> to vector<16x32xf32>
    %296 = arith.mulf %286, %295 : vector<16x32xf32>
    %297 = vector.broadcast %278 : vector<1x32xf32> to vector<16x32xf32>
    %298 = arith.mulf %296, %297 : vector<16x32xf32>
    %299 = vector.broadcast %280 : vector<1x32xf32> to vector<16x32xf32>
    %300 = arith.addf %298, %299 : vector<16x32xf32>
    %301 = arith.truncf %300 : vector<16x32xf32> to vector<16x32xbf16>
    %c1_132 = arith.constant 1 : index
    %c0_133 = arith.constant 0 : index
    %c0_134 = arith.constant 0 : index
    %302 = vector.load %arg6[%c1_132, %c0_133, %c0_134] : memref<2x32x64xbf16, #tpu.memory_space<vmem>>, vector<1x32x64xbf16>
    %303 = vector.shape_cast %302 : vector<1x32x64xbf16> to vector<32x64xbf16>
    %cst_135 = arith.constant dense<0.000000e+00> : vector<16x64xf32>
    %304 = tpu.matmul %301, %303, %cst_135 {dimension_numbers = #tpu.dot_dimension_numbers<[1], [0], [0], [1], [0, 0, 1, 1], [], []>} : vector<16x32xbf16>, vector<32x64xbf16>, vector<16x64xf32> -> vector<16x64xf32>
    %c1_136 = arith.constant 1 : index
    %c4_137 = arith.constant 4 : index
    %c0_138 = arith.constant 0 : index
    %305 = vector.load %arg3[%c1_136, %c4_137, %c0_138] : memref<3x8x128xf32, #tpu.memory_space<vmem>>, vector<1x1x64xf32>
    %306 = vector.shape_cast %305 : vector<1x1x64xf32> to vector<1x64xf32>
    %307 = vector.broadcast %306 : vector<1x64xf32> to vector<16x64xf32>
    %308 = arith.addf %304, %307 : vector<16x64xf32>
    %cst_139 = arith.constant 5.000000e-01 : f32
    %309 = vector.broadcast %cst_139 : f32 to vector<16x64xf32>
    %310 = arith.mulf %309, %308 : vector<16x64xf32>
    %cst_140 = arith.constant 4.471500e-02 : f32
    %311 = vector.broadcast %cst_140 : f32 to vector<16x64xf32>
    %312 = arith.mulf %311, %308 : vector<16x64xf32>
    %313 = arith.mulf %312, %308 : vector<16x64xf32>
    %314 = arith.mulf %313, %308 : vector<16x64xf32>
    %315 = arith.addf %308, %314 : vector<16x64xf32>
    %cst_141 = arith.constant 0.797884583 : f32
    %316 = vector.broadcast %cst_141 : f32 to vector<16x64xf32>
    %317 = arith.mulf %316, %315 : vector<16x64xf32>
    %318 = math.tanh %317 : vector<16x64xf32>
    %cst_142 = arith.constant 1.000000e+00 : f32
    %319 = vector.broadcast %cst_142 : f32 to vector<16x64xf32>
    %320 = arith.addf %319, %318 : vector<16x64xf32>
    %321 = arith.mulf %310, %320 : vector<16x64xf32>
    %322 = arith.truncf %321 : vector<16x64xf32> to vector<16x64xbf16>
    %c1_143 = arith.constant 1 : index
    %c0_144 = arith.constant 0 : index
    %c0_145 = arith.constant 0 : index
    %323 = vector.load %arg7[%c1_143, %c0_144, %c0_145] : memref<2x64x32xbf16, #tpu.memory_space<vmem>>, vector<1x64x32xbf16>
    %324 = vector.shape_cast %323 : vector<1x64x32xbf16> to vector<64x32xbf16>
    %cst_146 = arith.constant dense<0.000000e+00> : vector<16x32xf32>
    %325 = tpu.matmul %322, %324, %cst_146 {dimension_numbers = #tpu.dot_dimension_numbers<[1], [0], [0], [1], [0, 0, 1, 1], [], []>} : vector<16x64xbf16>, vector<64x32xbf16>, vector<16x32xf32> -> vector<16x32xf32>
    %c1_147 = arith.constant 1 : index
    %c5_148 = arith.constant 5 : index
    %c0_149 = arith.constant 0 : index
    %326 = vector.load %arg3[%c1_147, %c5_148, %c0_149] : memref<3x8x128xf32, #tpu.memory_space<vmem>>, vector<1x1x32xf32>
    %327 = vector.shape_cast %326 : vector<1x1x32xf32> to vector<1x32xf32>
    %328 = vector.broadcast %327 : vector<1x32xf32> to vector<16x32xf32>
    %329 = arith.addf %325, %328 : vector<16x32xf32>
    %330 = arith.addf %329, %300 : vector<16x32xf32>
    %c1_150 = arith.constant 1 : index
    %c6_151 = arith.constant 6 : index
    %c0_152 = arith.constant 0 : index
    %331 = vector.load %arg3[%c1_150, %c6_151, %c0_152] : memref<3x8x128xf32, #tpu.memory_space<vmem>>, vector<1x1x32xf32>
    %332 = vector.shape_cast %331 : vector<1x1x32xf32> to vector<1x32xf32>
    %c1_153 = arith.constant 1 : index
    %c7_154 = arith.constant 7 : index
    %c0_155 = arith.constant 0 : index
    %333 = vector.load %arg3[%c1_153, %c7_154, %c0_155] : memref<3x8x128xf32, #tpu.memory_space<vmem>>, vector<1x1x32xf32>
    %334 = vector.shape_cast %333 : vector<1x1x32xf32> to vector<1x32xf32>
    %cst_156 = arith.constant dense<0.000000e+00> : vector<16xf32>
    %335 = vector.multi_reduction <add>, %330, %cst_156 [1] : vector<16x32xf32> to vector<16xf32>
    %336 = vector.shape_cast %335 : vector<16xf32> to vector<16x1xf32>
    %cst_157 = arith.constant 3.200000e+01 : f32
    %337 = vector.broadcast %cst_157 : f32 to vector<16x1xf32>
    %338 = arith.divf %336, %337 : vector<16x1xf32>
    %339 = vector.broadcast %338 : vector<16x1xf32> to vector<16x32xf32>
    %340 = arith.subf %330, %339 : vector<16x32xf32>
    %341 = arith.mulf %340, %340 : vector<16x32xf32>
    %cst_158 = arith.constant dense<0.000000e+00> : vector<16xf32>
    %342 = vector.multi_reduction <add>, %341, %cst_158 [1] : vector<16x32xf32> to vector<16xf32>
    %343 = vector.shape_cast %342 : vector<16xf32> to vector<16x1xf32>
    %cst_159 = arith.constant 3.200000e+01 : f32
    %344 = vector.broadcast %cst_159 : f32 to vector<16x1xf32>
    %345 = arith.divf %343, %344 : vector<16x1xf32>
    %cst_160 = arith.constant 9.99999996E-13 : f32
    %346 = vector.broadcast %cst_160 : f32 to vector<16x1xf32>
    %347 = arith.addf %345, %346 : vector<16x1xf32>
    %348 = math.rsqrt %347 : vector<16x1xf32>
    %349 = vector.broadcast %348 : vector<16x1xf32> to vector<16x32xf32>
    %350 = arith.mulf %340, %349 : vector<16x32xf32>
    %351 = vector.broadcast %332 : vector<1x32xf32> to vector<16x32xf32>
    %352 = arith.mulf %350, %351 : vector<16x32xf32>
    %353 = vector.broadcast %334 : vector<1x32xf32> to vector<16x32xf32>
    %354 = arith.addf %352, %353 : vector<16x32xf32>
    %355 = vector.shape_cast %354 : vector<16x32xf32> to vector<2x8x32xf32>
    %356 = vector.extract_strided_slice %355 {offsets = [0, 0, 0], sizes = [2, 1, 32], strides = [1, 1, 1]} : vector<2x8x32xf32> to vector<2x1x32xf32>
    %357 = vector.shape_cast %356 : vector<2x1x32xf32> to vector<2x32xf32>
    %c2_161 = arith.constant 2 : index
    %c2_162 = arith.constant 2 : index
    %c0_163 = arith.constant 0 : index
    %358 = vector.load %arg3[%c2_161, %c2_162, %c0_163] : memref<3x8x128xf32, #tpu.memory_space<vmem>>, vector<1x1x32xf32>
    %359 = vector.shape_cast %358 : vector<1x1x32xf32> to vector<1x32xf32>
    %c2_164 = arith.constant 2 : index
    %c3_165 = arith.constant 3 : index
    %c0_166 = arith.constant 0 : index
    %360 = vector.load %arg3[%c2_164, %c3_165, %c0_166] : memref<3x8x128xf32, #tpu.memory_space<vmem>>, vector<1x1x1xf32>
    %361 = vector.shape_cast %360 : vector<1x1x1xf32> to vector<1x1xf32>
    %362 = vector.broadcast %359 : vector<1x32xf32> to vector<2x32xf32>
    %363 = arith.mulf %357, %362 : vector<2x32xf32>
    %cst_167 = arith.constant dense<0.000000e+00> : vector<2xf32>
    %364 = vector.multi_reduction <add>, %363, %cst_167 [1] : vector<2x32xf32> to vector<2xf32>
    %365 = vector.shape_cast %364 : vector<2xf32> to vector<2x1xf32>
    %366 = vector.broadcast %361 : vector<1x1xf32> to vector<2x1xf32>
    %367 = arith.addf %365, %366 : vector<2x1xf32>
    %cst_168 = arith.constant 0.000000e+00 : f32
    %368 = vector.broadcast %cst_168 : f32 to vector<2x1xf32>
    %369 = arith.subf %368, %367 : vector<2x1xf32>
    %370 = math.exp %369 : vector<2x1xf32>
    %cst_169 = arith.constant 1.000000e+00 : f32
    %371 = vector.broadcast %cst_169 : f32 to vector<2x1xf32>
    %372 = arith.addf %371, %370 : vector<2x1xf32>
    %cst_170 = arith.constant 1.000000e+00 : f32
    %373 = vector.broadcast %cst_170 : f32 to vector<2x1xf32>
    %374 = arith.divf %373, %372 : vector<2x1xf32>
    %c0_171 = arith.constant 0 : index
    %c0_172 = arith.constant 0 : index
    %375 = vector.load %arg8[%c0_171, %c0_172] : memref<2x128xf32, #tpu.memory_space<vmem>>, vector<2x32xf32>
    tpu.vector_store %arg8[%c0_171, %c0_172], %357 {strides = array<i32>} : memref<2x128xf32, #tpu.memory_space<vmem>>, vector<2x32xf32>,
    %c0_173 = arith.constant 0 : index
    %c32 = arith.constant 32 : index
    %376 = vector.load %arg8[%c0_173, %c32] : memref<2x128xf32, #tpu.memory_space<vmem>>, vector<2x1xf32>
    tpu.vector_store %arg8[%c0_173, %c32], %367 {strides = array<i32>} : memref<2x128xf32, #tpu.memory_space<vmem>>, vector<2x1xf32>,
    %c0_174 = arith.constant 0 : index
    %c33 = arith.constant 33 : index
    %377 = vector.load %arg8[%c0_174, %c33] : memref<2x128xf32, #tpu.memory_space<vmem>>, vector<2x1xf32>
    tpu.vector_store %arg8[%c0_174, %c33], %374 {strides = array<i32>} : memref<2x128xf32, #tpu.memory_space<vmem>>, vector<2x1xf32>,
    %cst_175 = arith.constant 0.000000e+00 : f32
    %378 = vector.broadcast %cst_175 : f32 to vector<2x94xf32>
    %c0_176 = arith.constant 0 : index
    %c34 = arith.constant 34 : index
    %379 = vector.load %arg8[%c0_176, %c34] : memref<2x128xf32, #tpu.memory_space<vmem>>, vector<2x94xf32>
    tpu.vector_store %arg8[%c0_176, %c34], %378 {strides = array<i32>} : memref<2x128xf32, #tpu.memory_space<vmem>>, vector<2x94xf32>,
    return
  }
  func.func @transform_0(%arg0: i32) -> (i32, i32, i32) {
    %c0_i32 = arith.constant 0 : i32
    %c0_i32_0 = arith.constant 0 : i32
    %c0_i32_1 = arith.constant 0 : i32
    %c0_i32_2 = arith.constant 0 : i32
    return %c0_i32, %c0_i32_0, %c0_i32_1 : i32, i32, i32
  }
  func.func @transform_1(%arg0: i32) -> (i32, i32) {
    %c0_i32 = arith.constant 0 : i32
    %c0_i32_0 = arith.constant 0 : i32
    %c0_i32_1 = arith.constant 0 : i32
    return %c0_i32, %c0_i32_0 : i32, i32
  }
  func.func @transform_2(%arg0: i32) -> (i32, i32, i32) {
    %c0_i32 = arith.constant 0 : i32
    %c0_i32_0 = arith.constant 0 : i32
    %c0_i32_1 = arith.constant 0 : i32
    %c0_i32_2 = arith.constant 0 : i32
    return %c0_i32, %c0_i32_0, %c0_i32_1 : i32, i32, i32
  }
  func.func @transform_3(%arg0: i32) -> (i32, i32, i32) {
    %c0_i32 = arith.constant 0 : i32
    %c0_i32_0 = arith.constant 0 : i32
    %c0_i32_1 = arith.constant 0 : i32
    %c0_i32_2 = arith.constant 0 : i32
    return %c0_i32, %c0_i32_0, %c0_i32_1 : i32, i32, i32
  }
  func.func @transform_4(%arg0: i32) -> (i32, i32, i32, i32) {
    %c0_i32 = arith.constant 0 : i32
    %c0_i32_0 = arith.constant 0 : i32
    %c0_i32_1 = arith.constant 0 : i32
    %c0_i32_2 = arith.constant 0 : i32
    %c0_i32_3 = arith.constant 0 : i32
    return %c0_i32, %c0_i32_0, %c0_i32_1, %c0_i32_2 : i32, i32, i32, i32
  }
  func.func @transform_5(%arg0: i32) -> (i32, i32, i32) {
    %c0_i32 = arith.constant 0 : i32
    %c0_i32_0 = arith.constant 0 : i32
    %c0_i32_1 = arith.constant 0 : i32
    %c0_i32_2 = arith.constant 0 : i32
    return %c0_i32, %c0_i32_0, %c0_i32_1 : i32, i32, i32
  }
  func.func @transform_6(%arg0: i32) -> (i32, i32, i32) {
    %c0_i32 = arith.constant 0 : i32
    %c0_i32_0 = arith.constant 0 : i32
    %c0_i32_1 = arith.constant 0 : i32
    %c0_i32_2 = arith.constant 0 : i32
    return %c0_i32, %c0_i32_0, %c0_i32_1 : i32, i32, i32
  }
  func.func @transform_7(%arg0: i32) -> (i32, i32) {
    %c0_i32 = arith.constant 0 : i32
    %c0_i32_0 = arith.constant 0 : i32
    %c0_i32_1 = arith.constant 0 : i32
    return %c0_i32, %c0_i32_0 : i32, i32
  }
}

</mosaic_0001>

<llo_original>
// kernel: _lambda_.1
$region0: #{_lambda_.1}
  #allocation0 [shape = 'u32[]', space=smem, size = 0x4, offset = 0x4, fixed_abs, tag = 'smem constant byte address 0x4 - core index']
  #allocation1 [shape = 'u32[72,128]{1,0:T(1,128)}', space=vmem, size = 0x9000, scoped, tag = 'internal scratch']
  %s0 = inlined_call_operand.vmem [shape: s32[3,2,8], index: 0, kind: input, shape index: {}]
  %s1 = inlined_call_operand.hbm [shape: f32[152,32], index: 1, kind: input, shape index: {}]
  %s2 = inlined_call_operand.hbm [shape: f32[3,8,128], index: 2, kind: input, shape index: {}]
  %s3 = inlined_call_operand.hbm [shape: bf16[2,32,128], index: 3, kind: input, shape index: {}]
  %s4 = inlined_call_operand.hbm [shape: bf16[2,2,16,32], index: 4, kind: input, shape index: {}]
  %s5 = inlined_call_operand.hbm [shape: bf16[2,32,64], index: 5, kind: input, shape index: {}]
  %s6 = inlined_call_operand.hbm [shape: bf16[2,64,32], index: 6, kind: input, shape index: {}]
  %s7 = inlined_call_operand.vmem [shape: f32[2,128], index: 7, kind: output, shape index: {}]
  %s8 = sld [smem:[#allocation0]]
  $region62: #{_lambda_.1} parent=0
    _
  %s10 = ssub.s32 1, %s8
  %s11 = scalar_select 0, %s10, %s8
  $region1: #{_lambda_.1} parent=0
    #allocation2 [shape = 'u8[77824]{0}', space=vmem, size = 0x13000, scoped, tag = 'input window, operand 1, single buffered']
    #allocation3 [shape = 's32[1]{0}', space=sflag, size = 0x4, scoped, tag = 'scoped memory for _lambda_.1']
    #allocation4 [shape = 'u8[12288]{0}', space=vmem, size = 0x3000, scoped, tag = 'input window, operand 2, single buffered']
    #allocation5 [shape = 's32[1]{0}', space=sflag, size = 0x4, scoped, tag = 'scoped memory for _lambda_.1']
    #allocation6 [shape = 'u8[16384]{0}', space=vmem, size = 0x4000, scoped, tag = 'input window, operand 3, single buffered']
    #allocation7 [shape = 'u8[16384]{0}', space=vmem, size = 0x4000, scoped, tag = 'input window, operand 4, single buffered']
    #allocation8 [shape = 's32[1]{0}', space=sflag, size = 0x4, scoped, tag = 'scoped memory for _lambda_.1']
    #allocation9 [shape = 'u8[16384]{0}', space=vmem, size = 0x4000, scoped, tag = 'input window, operand 5, single buffered']
    #allocation10 [shape = 'u8[32768]{0}', space=vmem, size = 0x8000, scoped, tag = 'input window, operand 6, single buffered']
    #allocation11 [shape = 's32[1]{0}', space=sflag, size = 0x4, scoped, tag = 'scoped memory for _lambda_.1']
    %12 = vsyncpa [#allocation3], 0
    %13 = vsyncpa [#allocation5], 0
    %14 = vsyncpa [#allocation8], 0
    %15 = vsyncpa [#allocation11], 0
    // Predicated region
    $region2: #{_lambda_.1} parent=1 // pred_check
      _
    $region3: #{_lambda_.1} parent=1 // pred_check_branch
      %17 = sbr.rel (0) target = $region5
    $region4: #{_lambda_.1} parent=1 // pred_region
      _
    $region5: #{_lambda_.1} parent=1 // pred_fallthru
      _
    // Predicated region
    $region6: #{_lambda_.1} parent=1 // pred_check
      _
    $region7: #{_lambda_.1} parent=1 // pred_check_branch
      %19 = sbr.rel (0) target = $region9
    $region8: #{_lambda_.1} parent=1 // pred_region
      %21 = vsyncadd [#allocation3], 0
      %s22 = sshll.u32 %s1, 4
      %s23 = int_to_ptr.hbm [resolvable:$true] %s22
      %s24 = sshll.u32 [#allocation2], 4
      %s25 = int_to_ptr.vmem [resolvable:$true] %s24
      %30 = dma.hbm_to_vmem [thread:$0]  %s23, 2432, %s25, [#allocation3], 128, 128, 8
    $region9: #{_lambda_.1} parent=1 // pred_fallthru
      _
    // Predicated region
    $region10: #{_lambda_.1} parent=1 // pred_check
      _
    $region11: #{_lambda_.1} parent=1 // pred_check_branch
      %32 = sbr.rel (0) target = $region13
    $region12: #{_lambda_.1} parent=1 // pred_region
      %34 = vsyncadd [#allocation5], 0
      %s35 = sshll.u32 %s2, 4
      %s36 = int_to_ptr.hbm [resolvable:$true] %s35
      %s37 = sshll.u32 [#allocation4], 4
      %s38 = int_to_ptr.vmem [resolvable:$true] %s37
      %43 = dma.hbm_to_vmem [thread:$0]  %s36, 384, %s38, [#allocation5], 128, 128, 8
    $region13: #{_lambda_.1} parent=1 // pred_fallthru
      _
    // Predicated region
    $region14: #{_lambda_.1} parent=1 // pred_check
      _
    $region15: #{_lambda_.1} parent=1 // pred_check_branch
      %45 = sbr.rel (0) target = $region17
    $region16: #{_lambda_.1} parent=1 // pred_region
      %47 = vsyncadd [#allocation5], 0
      %s48 = sshll.u32 %s3, 4
      %s49 = int_to_ptr.hbm [resolvable:$true] %s48
      %s50 = sshll.u32 [#allocation6], 4
      %s51 = int_to_ptr.vmem [resolvable:$true] %s50
      %56 = dma.hbm_to_vmem [thread:$0]  %s49, 512, %s51, [#allocation5], 64, 64, 4
    $region17: #{_lambda_.1} parent=1 // pred_fallthru
      _
    // Predicated region
    $region18: #{_lambda_.1} parent=1 // pred_check
      _
    $region19: #{_lambda_.1} parent=1 // pred_check_branch
      %58 = sbr.rel (0) target = $region21
    $region20: #{_lambda_.1} parent=1 // pred_region
      %60 = vsyncadd [#allocation8], 0
      %s61 = sshll.u32 %s4, 4
      %s62 = int_to_ptr.hbm [resolvable:$true] %s61
      %s63 = sshll.u32 [#allocation7], 4
      %s64 = int_to_ptr.vmem [resolvable:$true] %s63
      %69 = dma.hbm_to_vmem [thread:$0]  %s62, 512, %s64, [#allocation8], 64, 64, 4
    $region21: #{_lambda_.1} parent=1 // pred_fallthru
      _
    // Predicated region
    $region22: #{_lambda_.1} parent=1 // pred_check
      _
    $region23: #{_lambda_.1} parent=1 // pred_check_branch
      %71 = sbr.rel (0) target = $region25
    $region24: #{_lambda_.1} parent=1 // pred_region
      %73 = vsyncadd [#allocation8], 0
      %s74 = sshll.u32 %s5, 4
      %s75 = int_to_ptr.hbm [resolvable:$true] %s74
      %s76 = sshll.u32 [#allocation9], 4
      %s77 = int_to_ptr.vmem [resolvable:$true] %s76
      %82 = dma.hbm_to_vmem [thread:$0]  %s75, 512, %s77, [#allocation8], 64, 64, 4
    $region25: #{_lambda_.1} parent=1 // pred_fallthru
      _
    // Predicated region
    $region26: #{_lambda_.1} parent=1 // pred_check
      _
    $region27: #{_lambda_.1} parent=1 // pred_check_branch
      %84 = sbr.rel (0) target = $region29
    $region28: #{_lambda_.1} parent=1 // pred_region
      %86 = vsyncadd [#allocation11], 0
      %s87 = sshll.u32 %s6, 4
      %s88 = int_to_ptr.hbm [resolvable:$true] %s87
      %s89 = sshll.u32 [#allocation10], 4
      %s90 = int_to_ptr.vmem [resolvable:$true] %s89
      %95 = dma.hbm_to_vmem [thread:$0]  %s88, 1024, %s90, [#allocation11], 64, 64, 4
    $region29: #{_lambda_.1} parent=1 // pred_fallthru
      _
    // Predicated region
    $region30: #{_lambda_.1} parent=1 // pred_check
      _
    $region31: #{_lambda_.1} parent=1 // pred_check_branch
      %97 = sbr.rel (0) target = $region33
    $region32: #{_lambda_.1} parent=1 // pred_region
      %99 = dma.done [#allocation3], 2432
    $region33: #{_lambda_.1} parent=1 // pred_fallthru
      _
    // Predicated region
    $region34: #{_lambda_.1} parent=1 // pred_check
      _
    $region35: #{_lambda_.1} parent=1 // pred_check_branch
      %101 = sbr.rel (0) target = $region37
    $region36: #{_lambda_.1} parent=1 // pred_region
      %103 = dma.done [#allocation5], 384
    $region37: #{_lambda_.1} parent=1 // pred_fallthru
      _
    // Predicated region
    $region38: #{_lambda_.1} parent=1 // pred_check
      _
    $region39: #{_lambda_.1} parent=1 // pred_check_branch
      %105 = sbr.rel (0) target = $region41
    $region40: #{_lambda_.1} parent=1 // pred_region
      %107 = dma.done [#allocation5], 512
    $region41: #{_lambda_.1} parent=1 // pred_fallthru
      _
    // Predicated region
    $region42: #{_lambda_.1} parent=1 // pred_check
      _
    $region43: #{_lambda_.1} parent=1 // pred_check_branch
      %109 = sbr.rel (0) target = $region45
    $region44: #{_lambda_.1} parent=1 // pred_region
      %111 = dma.done [#allocation8], 512
    $region45: #{_lambda_.1} parent=1 // pred_fallthru
      _
    // Predicated region
    $region46: #{_lambda_.1} parent=1 // pred_check
      _
    $region47: #{_lambda_.1} parent=1 // pred_check_branch
      %113 = sbr.rel (0) target = $region49
    $region48: #{_lambda_.1} parent=1 // pred_region
      %115 = dma.done [#allocation8], 512
    $region49: #{_lambda_.1} parent=1 // pred_fallthru
      _
    // Predicated region
    $region50: #{_lambda_.1} parent=1 // pred_check
      _
    $region51: #{_lambda_.1} parent=1 // pred_check_branch
      %117 = sbr.rel (0) target = $region53
    $region52: #{_lambda_.1} parent=1 // pred_region
      %119 = dma.done [#allocation11], 1024
    $region53: #{_lambda_.1} parent=1 // pred_fallthru
      _
    %v121 = vld [vmem:[%s0] sm:$0x3]
    %s122 = scalar_lea.vmem %s0, 2
    %v123 = vld [vmem:[%s122] sm:$0x3]
    %s124 = scalar_lea.vmem %s0, 4
    %v125 = vld [vmem:[%s124] sm:$0x3]
    %v126 = vcvt.s32.f32 %v125
    %v127 = vlaneseq
    %v128 = vand.u32 %v127, 127
    %v129 = vperm.slane %v121, 0
    %v130 = vlaneseq
    %v131 = vshrl.u32 %v130, 7
    %133 = vset.pattern.permute.xlu0 %v131
    %134 = vperm.xlu0 %133, %v129
    %v135 = vpop.permute.xlu0 %134
    %v136 = vperm.slane %v121, 1
    %v137 = vlaneseq
    %v138 = vshrl.u32 %v137, 7
    %140 = vset.pattern.permute.xlu0 %v138
    %141 = vperm.xlu0 %140, %v136
    %v142 = vpop.permute.xlu0 %141
    %vm143 = vcmp.eq.s32.totalorder %v128, %v135
    %vm144 = vcmp.eq.s32.totalorder %v128, %v142
    %v145 = vsel %vm143, 1, 0
    %v146 = vsel %vm144, 1, 0
    %v147 = vcvt.s32.f32 %v145
    %v148 = vcvt.s32.f32 %v146
    %v149 = vld [vmem:[#allocation2] sm:$0xff]
    %v150 = vld [vmem:[#allocation2 + $0x8] sm:$0xff]
    %v151 = vld [vmem:[#allocation2 + $0x10] sm:$0xff]
    %v152 = vld [vmem:[#allocation2 + $0x18] sm:$0xff]
    %v153 = vld [vmem:[#allocation2 + $0x20] sm:$0xff]
    %v154 = vld [vmem:[#allocation2 + $0x28] sm:$0xff]
    %v155 = vld [vmem:[#allocation2 + $0x30] sm:$0xff]
    %v156 = vld [vmem:[#allocation2 + $0x38] sm:$0xff]
    %v157 = vld [vmem:[#allocation2 + $0x40] sm:$0xff]
    %v158 = vld [vmem:[#allocation2 + $0x48] sm:$0xff]
    %v159 = vld [vmem:[#allocation2 + $0x50] sm:$0xff]
    %v160 = vld [vmem:[#allocation2 + $0x58] sm:$0xff]
    %v161 = vld [vmem:[#allocation2 + $0x60] sm:$0xff]
    %v162 = vld [vmem:[#allocation2 + $0x68] sm:$0xff]
    %v163 = vld [vmem:[#allocation2 + $0x70] sm:$0xff]
    %v164 = vld [vmem:[#allocation2 + $0x78] sm:$0xff]
    %v165 = vld [vmem:[#allocation2 + $0x80] sm:$0xff]
    %v166 = vld [vmem:[#allocation2 + $0x90] sm:$0x1]
    %v167 = vld [vmem:[#allocation2 + $0x91] sm:$0x1]
    %v168 = vperm.slane %v123, 0
    %v169 = vlaneseq
    %v170 = vshrl.u32 %v169, 7
    %172 = vset.pattern.permute.xlu0 %v170
    %173 = vperm.xlu0 %172, %v168
    %v174 = vpop.permute.xlu0 %173
    %v175 = vperm.slane %v123, 1
    %v176 = vlaneseq
    %v177 = vshrl.u32 %v176, 7
    %179 = vset.pattern.permute.xlu0 %v177
    %180 = vperm.xlu0 %179, %v175
    %v181 = vpop.permute.xlu0 %180
    %vm182 = vcmp.eq.s32.totalorder %v174, 0
    %vm183 = vcmp.eq.s32.totalorder %v181, 0
    %v184 = vsel %vm182, 1, 0
    %v185 = vsel %vm183, 1, 0
    %vm186 = vcmp.eq.s32.totalorder %v184, 1
    %vm187 = vcmp.eq.s32.totalorder %v185, 1
    %v188 = vperm.slane %v166, 0
    %v189 = vperm.slane %v167, 0
    %v190 = vsel %vm186, %v188, %v189
    %v191 = vsel %vm187, %v188, %v189
    %192 = vmatpush.msra.mxu0 %v164
    %193 = vmatpush.msra.mxu0 %v163
    %194 = vmatpush.msra.mxu0 %v162
    %195 = vmatpush.msra.mxu0 %v161
    %196 = vmatpush.msra.mxu0 %v160
    %197 = vmatpush.msra.mxu0 %v159
    %198 = vmatpush.msra.mxu0 %v158
    %199 = vmatpush.msra.mxu0 %v157
    %200 = vmatpush.msra.mxu0 %v156
    %201 = vmatpush.msra.mxu0 %v155
    %202 = vmatpush.msra.mxu0 %v154
    %203 = vmatpush.msra.mxu0 %v153
    %204 = vmatpush.msra.mxu0 %v152
    %205 = vmatpush.msra.mxu0 %v151
    %206 = vmatpush.msra.mxu0 %v150
    %207 = vmatpush.msra.mxu0 %v149
    %208 = vmatmul.f32.gmra.mxu0 %v147
    %v209 = vpop.f32.mrf.mxu0
    %v210 = vadd.f32 %v165, %v209
    %211 = vmatmul.f32.gmra.mxu0 %v148
    %v212 = vpop.f32.mrf.mxu0
    %v213 = vadd.f32 %v165, %v212
    %214 = vdwg.mxu0
    %v215 = vadd.f32 %v210, %v190
    %v216 = vadd.f32 %v213, %v191
    %s217 = scalar_lea.vmem [#allocation4], 16
    %v218 = vld [vmem:[%s217] sm:$0x1]
    %v219 = vld [vmem:[%s217 + $0x1] sm:$0x1]
    %vm220 = vcmask 261120
    %v221 = vsel %vm220, %v215, 0.0
    %222 = vadd.xlane.f32.xlu0 %v221
    %v223 = vpop.xlane.xlu0 %222
    %v224 = vsel %vm220, %v216, 0.0
    %225 = vadd.xlane.f32.xlu0 %v224
    %v226 = vpop.xlane.xlu0 %225
    %v227 = vrcp.pop 32.0
    %v228 = vmul.f32 32.0, %v227
    %v229 = vsub.f32 1.0, %v228
    %v230 = vmul.f32 %v227, %v229
    %v231 = vadd.f32 %v227, %v230
    %vm232 = vweird.f32 %v227
    %v233 = vsel %vm232, %v227, %v231
    %v234 = vmul.f32 %v223, %v233
    %v235 = vmul.f32 %v226, %v233
    %v236 = vsub.f32 %v215, %v234
    %v237 = vsub.f32 %v216, %v235
    %v238 = vmul.f32 %v236, %v236
    %v239 = vmul.f32 %v237, %v237
    %v240 = vsel %vm220, %v238, 0.0
    %241 = vadd.xlane.f32.xlu0 %v240
    %v242 = vpop.xlane.xlu0 %241
    %v243 = vsel %vm220, %v239, 0.0
    %244 = vadd.xlane.f32.xlu0 %v243
    %v245 = vpop.xlane.xlu0 %244
    %v246 = vmul.f32 %v242, %v233
    %v247 = vmul.f32 %v245, %v233
    %v248 = vadd.f32 %v246, 1e-12
    %v249 = vadd.f32 %v247, 1e-12
    %v250 = vrsqrt.pop %v248
    %v251 = vmul.f32 %v250, %v248
    %v252 = vmul.f32 %v251, %v250
    %v253 = vmul.f32 0.5, %v252
    %v254 = vsub.f32 1.5, %v253
    %v255 = vmul.f32 %v250, %v254
    %vm256 = vweird.f32 %v248
    %vm257 = vweird.f32 %v250
    %vm258 = vmor %vm256, %vm257
    %v259 = vsel %vm258, %v250, %v255
    %v260 = vrsqrt.pop %v249
    %v261 = vmul.f32 %v260, %v249
    %v262 = vmul.f32 %v261, %v260
    %v263 = vmul.f32 0.5, %v262
    %v264 = vsub.f32 1.5, %v263
    %v265 = vmul.f32 %v260, %v264
    %vm266 = vweird.f32 %v249
    %vm267 = vweird.f32 %v260
    %vm268 = vmor %vm266, %vm267
    %v269 = vsel %vm268, %v260, %v265
    %v270 = vmul.f32 %v236, %v259
    %v271 = vmul.f32 %v237, %v269
    %v272 = vperm.slane %v218, 0
    %v273 = vmul.f32 %v270, %v272
    %v274 = vmul.f32 %v271, %v272
    %v275 = vperm.slane %v219, 0
    %v276 = vadd.f32 %v273, %v275
    %v277 = vadd.f32 %v274, %v275
    %v278 = vsub.f32 1.0, %v126
    %v279 = vmul.f32 %v278, -10000.0
    %v281 = vrot.slane %v279, 1
    %v282 = vpack.c.bf16 %v277, %v276
    %v283 = vld [vmem:[#allocation6] sm:$0xf]
    %v284 = vld [vmem:[#allocation6 + $0x4] sm:$0xf]
    %v285 = vld [vmem:[#allocation6 + $0x8] sm:$0xf]
    %v286 = vld [vmem:[#allocation6 + $0xc] sm:$0xf]
    %v287 = vld [vmem:[#allocation4] sm:$0x1]
    %v288 = vperm.slane %v287, 0
    %v293 = vunpack.c.l.b16 %v283
    %v294 = vunpack.c.l.b16 %v284
    %v295 = vunpack.c.l.b16 %v285
    %v296 = vunpack.c.l.b16 %v286
    %v297 = vpack.c.b16 %v294, %v293
    %v298 = vpack.c.b16 %v296, %v295
    %v302 = vsel %vm220, %v282, 0
    %304 = vmatpush.bf16.msra.mxu0 0
    %305 = vmatpush.bf16.msra.mxu0 0
    %306 = vmatpush.bf16.msra.mxu0 0
    %307 = vmatpush.bf16.msra.mxu0 0
    %308 = vmatpush.bf16.msra.mxu0 0
    %309 = vmatpush.bf16.msra.mxu0 0
    %310 = vmatpush.bf16.msra.mxu0 %v298
    %311 = vmatpush.bf16.msra.mxu0 %v297
    %312 = vmatmul.bf16.gmra.mxu0 %v302
    %v313 = vpop.f32.mrf.mxu0
    %v314 = vadd.f32 %v288, %v313
    %v315 = vpop.f32.mrf.mxu0
    %v316 = vadd.f32 %v288, %v315
    %317 = vdwg.mxu0
    %v318 = vpack.c.bf16 %v314, %v314
    %v319 = vpack.c.bf16 %v316, %v316
    %v321 = vunpack.c.l.b16 %v318
    %v322 = vpack.c.b16 %v321, %v321
    %323 = vrot.lane.b32.xlu0 %v322, 96
    %v324 = vpop.permute.xlu0 %323
    %vm325 = vcmask 130048
    %v327 = vsel %vm325, %v318, 0
    %v330 = vsel %vm325, %v324, 0
    %332 = vmatpush.bf16.xpose.msra.mxu0 0
    %333 = vmatpush.bf16.xpose.msra.mxu0 0
    %334 = vmatpush.bf16.xpose.msra.mxu0 0
    %335 = vmatpush.bf16.xpose.msra.mxu0 0
    %336 = vmatpush.bf16.xpose.msra.mxu0 0
    %337 = vmatpush.bf16.xpose.msra.mxu0 0
    %338 = vmatpush.bf16.xpose.msra.mxu0 0
    %339 = vmatpush.bf16.xpose.msra.mxu0 %v330
    %340 = vmatmul.bf16.gmra.mxu0 %v327
    %v341 = vpop.f32.mrf.mxu0
    %v342 = vadd.f32 0.0, %v341
    %v343 = vpop.f32.mrf.mxu0
    %344 = vdwg.mxu0
    %v346 = vunpack.c.l.b16 %v319
    %v347 = vpack.c.b16 %v346, %v346
    %348 = vrot.lane.b32.xlu0 %v347, 96
    %v349 = vpop.permute.xlu0 %348
    %v351 = vsel %vm325, %v319, 0
    %v354 = vsel %vm325, %v349, 0
    %356 = vmatpush.bf16.xpose.msra.mxu0 0
    %357 = vmatpush.bf16.xpose.msra.mxu0 0
    %358 = vmatpush.bf16.xpose.msra.mxu0 0
    %359 = vmatpush.bf16.xpose.msra.mxu0 0
    %360 = vmatpush.bf16.xpose.msra.mxu0 0
    %361 = vmatpush.bf16.xpose.msra.mxu0 0
    %362 = vmatpush.bf16.xpose.msra.mxu0 0
    %363 = vmatpush.bf16.xpose.msra.mxu0 %v354
    %364 = vmatmul.bf16.gmra.mxu0 %v351
    %v365 = vpop.f32.mrf.mxu0
    %v366 = vadd.f32 0.0, %v365
    %v367 = vpop.f32.mrf.mxu0
    %368 = vdwg.mxu0
    %v369 = vmul.f32 %v342, 0.25
    %v370 = vmul.f32 %v366, 0.25
    %v371 = vperm.slane %v279, 0
    %v372 = vperm.slane %v281, 0
    %v375 = vadd.f32 %v369, %v371
    %v376 = vadd.f32 %v370, %v372
    %vm377 = vcmask 64512
    %v378 = vsel %vm377, %v375, -inf
    %379 = vmax.xlane.f32.xlu0 %v378
    %v380 = vpop.xlane.xlu0 %379
    %v381 = vsel %vm377, %v376, -inf
    %382 = vmax.xlane.f32.xlu0 %v381
    %v383 = vpop.xlane.xlu0 %382
    %v384 = vsub.f32 %v375, %v380
    %v385 = vsub.f32 %v376, %v383
    %v386 = vmul.f32 %v384, 1.442695
    %v387 = vpow.pop %v386
    %v388 = vmul.f32 %v385, 1.442695
    %v389 = vpow.pop %v388
    %v390 = vsel %vm377, %v387, 0.0
    %391 = vadd.xlane.f32.xlu0 %v390
    %v392 = vpop.xlane.xlu0 %391
    %v393 = vsel %vm377, %v389, 0.0
    %394 = vadd.xlane.f32.xlu0 %v393
    %v395 = vpop.xlane.xlu0 %394
    %v396 = vrcp.pop %v392
    %v397 = vmul.f32 %v392, %v396
    %v398 = vsub.f32 1.0, %v397
    %v399 = vmul.f32 %v396, %v398
    %v400 = vadd.f32 %v396, %v399
    %vm401 = vweird.f32 %v392
    %vm402 = vweird.f32 %v396
    %vm403 = vmor %vm401, %vm402
    %v404 = vsel %vm403, %v396, %v400
    %v405 = vand.u32 2147483647, %v392
    %vm406 = vcmp.eq.f32.partialorder %v405, 8.507059e+37
    %v407 = vand.u32 %v392, 2147483648
    %v408 = vor.u32 1.1754944e-38, %v407
    %v409 = vsel %vm406, %v408, %v404
    %v410 = vmul.f32 %v387, %v409
    %v411 = vrcp.pop %v395
    %v412 = vmul.f32 %v395, %v411
    %v413 = vsub.f32 1.0, %v412
    %v414 = vmul.f32 %v411, %v413
    %v415 = vadd.f32 %v411, %v414
    %vm416 = vweird.f32 %v395
    %vm417 = vweird.f32 %v411
    %vm418 = vmor %vm416, %vm417
    %v419 = vsel %vm418, %v411, %v415
    %v420 = vand.u32 2147483647, %v395
    %vm421 = vcmp.eq.f32.partialorder %v420, 8.507059e+37
    %v422 = vand.u32 %v395, 2147483648
    %v423 = vor.u32 1.1754944e-38, %v422
    %v424 = vsel %vm421, %v423, %v419
    %v425 = vmul.f32 %v389, %v424
    %v426 = vpack.c.bf16 %v410, %v410
    %v427 = vpack.c.bf16 %v425, %v425
    %428 = vrot.lane.b32.xlu0 %v322, 64
    %v429 = vpop.permute.xlu0 %428
    %v431 = vsel %vm377, %v426, 0
    %vm433 = vcmask 1043456
    %v435 = vsel %vm433, %v429, 0
    %437 = vmatpush.bf16.msra.mxu0 0
    %438 = vmatpush.bf16.msra.mxu0 0
    %439 = vmatpush.bf16.msra.mxu0 0
    %440 = vmatpush.bf16.msra.mxu0 0
    %441 = vmatpush.bf16.msra.mxu0 0
    %442 = vmatpush.bf16.msra.mxu0 0
    %443 = vmatpush.bf16.msra.mxu0 0
    %444 = vmatpush.bf16.msra.mxu0 %v435
    %445 = vmatmul.bf16.gmra.mxu0 %v431
    %v446 = vpop.f32.mrf.mxu0
    %v447 = vadd.f32 0.0, %v446
    %v448 = vpop.f32.mrf.mxu0
    %449 = vdwg.mxu0
    %450 = vrot.lane.b32.xlu0 %v347, 64
    %v451 = vpop.permute.xlu0 %450
    %v453 = vsel %vm377, %v427, 0
    %v456 = vsel %vm433, %v451, 0
    %458 = vmatpush.bf16.msra.mxu0 0
    %459 = vmatpush.bf16.msra.mxu0 0
    %460 = vmatpush.bf16.msra.mxu0 0
    %461 = vmatpush.bf16.msra.mxu0 0
    %462 = vmatpush.bf16.msra.mxu0 0
    %463 = vmatpush.bf16.msra.mxu0 0
    %464 = vmatpush.bf16.msra.mxu0 0
    %465 = vmatpush.bf16.msra.mxu0 %v456
    %466 = vmatmul.bf16.gmra.mxu0 %v453
    %v467 = vpop.f32.mrf.mxu0
    %v468 = vadd.f32 0.0, %v467
    %v469 = vpop.f32.mrf.mxu0
    %470 = vdwg.mxu0
    %v471 = vpack.c.bf16 %v468, %v447
    %v472 = vld [vmem:[#allocation7] sm:$0xf]
    %v473 = vld [vmem:[#allocation7 + $0x4] sm:$0xf]
    %474 = vrot.lane.b32.xlu0 %v322, 112
    %v475 = vpop.permute.xlu0 %474
    %476 = vrot.lane.b32.xlu0 %v322, 80
    %v477 = vpop.permute.xlu0 %476
    %v479 = vsel %vm325, %v475, 0
    %v482 = vsel %vm325, %v477, 0
    %484 = vmatpush.bf16.xpose.msra.mxu0 0
    %485 = vmatpush.bf16.xpose.msra.mxu0 0
    %486 = vmatpush.bf16.xpose.msra.mxu0 0
    %487 = vmatpush.bf16.xpose.msra.mxu0 0
    %488 = vmatpush.bf16.xpose.msra.mxu0 0
    %489 = vmatpush.bf16.xpose.msra.mxu0 0
    %490 = vmatpush.bf16.xpose.msra.mxu0 0
    %491 = vmatpush.bf16.xpose.msra.mxu0 %v482
    %492 = vmatmul.bf16.gmra.mxu0 %v479
    %v493 = vpop.f32.mrf.mxu0
    %v494 = vadd.f32 0.0, %v493
    %v495 = vpop.f32.mrf.mxu0
    %496 = vdwg.mxu0
    %497 = vrot.lane.b32.xlu0 %v347, 112
    %v498 = vpop.permute.xlu0 %497
    %499 = vrot.lane.b32.xlu0 %v347, 80
    %v500 = vpop.permute.xlu0 %499
    %v502 = vsel %vm325, %v498, 0
    %v505 = vsel %vm325, %v500, 0
    %507 = vmatpush.bf16.xpose.msra.mxu0 0
    %508 = vmatpush.bf16.xpose.msra.mxu0 0
    %509 = vmatpush.bf16.xpose.msra.mxu0 0
    %510 = vmatpush.bf16.xpose.msra.mxu0 0
    %511 = vmatpush.bf16.xpose.msra.mxu0 0
    %512 = vmatpush.bf16.xpose.msra.mxu0 0
    %513 = vmatpush.bf16.xpose.msra.mxu0 0
    %514 = vmatpush.bf16.xpose.msra.mxu0 %v505
    %515 = vmatmul.bf16.gmra.mxu0 %v502
    %v516 = vpop.f32.mrf.mxu0
    %v517 = vadd.f32 0.0, %v516
    %v518 = vpop.f32.mrf.mxu0
    %519 = vdwg.mxu0
    %v520 = vmul.f32 %v494, 0.25
    %v521 = vmul.f32 %v517, 0.25
    %v522 = vadd.f32 %v520, %v371
    %v523 = vadd.f32 %v521, %v372
    %v524 = vsel %vm377, %v522, -inf
    %525 = vmax.xlane.f32.xlu0 %v524
    %v526 = vpop.xlane.xlu0 %525
    %v527 = vsel %vm377, %v523, -inf
    %528 = vmax.xlane.f32.xlu0 %v527
    %v529 = vpop.xlane.xlu0 %528
    %v530 = vsub.f32 %v522, %v526
    %v531 = vsub.f32 %v523, %v529
    %v532 = vmul.f32 %v530, 1.442695
    %v533 = vpow.pop %v532
    %v534 = vmul.f32 %v531, 1.442695
    %v535 = vpow.pop %v534
    %v536 = vsel %vm377, %v533, 0.0
    %537 = vadd.xlane.f32.xlu0 %v536
    %v538 = vpop.xlane.xlu0 %537
    %v539 = vsel %vm377, %v535, 0.0
    %540 = vadd.xlane.f32.xlu0 %v539
    %v541 = vpop.xlane.xlu0 %540
    %v542 = vrcp.pop %v538
    %v543 = vmul.f32 %v538, %v542
    %v544 = vsub.f32 1.0, %v543
    %v545 = vmul.f32 %v542, %v544
    %v546 = vadd.f32 %v542, %v545
    %vm547 = vweird.f32 %v538
    %vm548 = vweird.f32 %v542
    %vm549 = vmor %vm547, %vm548
    %v550 = vsel %vm549, %v542, %v546
    %v551 = vand.u32 2147483647, %v538
    %vm552 = vcmp.eq.f32.partialorder %v551, 8.507059e+37
    %v553 = vand.u32 %v538, 2147483648
    %v554 = vor.u32 1.1754944e-38, %v553
    %v555 = vsel %vm552, %v554, %v550
    %v556 = vmul.f32 %v533, %v555
    %v557 = vrcp.pop %v541
    %v558 = vmul.f32 %v541, %v557
    %v559 = vsub.f32 1.0, %v558
    %v560 = vmul.f32 %v557, %v559
    %v561 = vadd.f32 %v557, %v560
    %vm562 = vweird.f32 %v541
    %vm563 = vweird.f32 %v557
    %vm564 = vmor %vm562, %vm563
    %v565 = vsel %vm564, %v557, %v561
    %v566 = vand.u32 2147483647, %v541
    %vm567 = vcmp.eq.f32.partialorder %v566, 8.507059e+37
    %v568 = vand.u32 %v541, 2147483648
    %v569 = vor.u32 1.1754944e-38, %v568
    %v570 = vsel %vm567, %v569, %v565
    %v571 = vmul.f32 %v535, %v570
    %v572 = vpack.c.bf16 %v556, %v556
    %v573 = vpack.c.bf16 %v571, %v571
    %574 = vrot.lane.b32.xlu0 %v322, 48
    %v575 = vpop.permute.xlu0 %574
    %v577 = vsel %vm377, %v572, 0
    %v580 = vsel %vm433, %v575, 0
    %582 = vmatpush.bf16.msra.mxu0 0
    %583 = vmatpush.bf16.msra.mxu0 0
    %584 = vmatpush.bf16.msra.mxu0 0
    %585 = vmatpush.bf16.msra.mxu0 0
    %586 = vmatpush.bf16.msra.mxu0 0
    %587 = vmatpush.bf16.msra.mxu0 0
    %588 = vmatpush.bf16.msra.mxu0 0
    %589 = vmatpush.bf16.msra.mxu0 %v580
    %590 = vmatmul.bf16.gmra.mxu0 %v577
    %v591 = vpop.f32.mrf.mxu0
    %v592 = vadd.f32 0.0, %v591
    %v593 = vpop.f32.mrf.mxu0
    %594 = vdwg.mxu0
    %595 = vrot.lane.b32.xlu0 %v347, 48
    %v596 = vpop.permute.xlu0 %595
    %v598 = vsel %vm377, %v573, 0
    %v601 = vsel %vm433, %v596, 0
    %603 = vmatpush.bf16.msra.mxu0 0
    %604 = vmatpush.bf16.msra.mxu0 0
    %605 = vmatpush.bf16.msra.mxu0 0
    %606 = vmatpush.bf16.msra.mxu0 0
    %607 = vmatpush.bf16.msra.mxu0 0
    %608 = vmatpush.bf16.msra.mxu0 0
    %609 = vmatpush.bf16.msra.mxu0 0
    %610 = vmatpush.bf16.msra.mxu0 %v601
    %611 = vmatmul.bf16.gmra.mxu0 %v598
    %v612 = vpop.f32.mrf.mxu0
    %v613 = vadd.f32 0.0, %v612
    %v614 = vpop.f32.mrf.mxu0
    %615 = vdwg.mxu0
    %v616 = vpack.c.bf16 %v613, %v592
    %s617 = scalar_lea.vmem [#allocation7], 8
    %v618 = vld [vmem:[%s617] sm:$0xf]
    %v619 = vld [vmem:[%s617 + $0x4] sm:$0xf]
    %v622 = vunpack.c.l.b16 %v618
    %v623 = vunpack.c.l.b16 %v619
    %v624 = vpack.c.b16 %v623, %v622
    %v627 = vsel %vm325, %v616, 0
    %629 = vmatpush.bf16.msra.mxu0 0
    %630 = vmatpush.bf16.msra.mxu0 0
    %631 = vmatpush.bf16.msra.mxu0 0
    %632 = vmatpush.bf16.msra.mxu0 0
    %633 = vmatpush.bf16.msra.mxu0 0
    %634 = vmatpush.bf16.msra.mxu0 0
    %635 = vmatpush.bf16.msra.mxu0 0
    %636 = vmatpush.bf16.msra.mxu0 %v624
    %637 = vmatmul.bf16.gmra.mxu0 %v627
    %v638 = vpop.f32.mrf.mxu0
    %v639 = vadd.f32 0.0, %v638
    %v640 = vpop.f32.mrf.mxu0
    %v641 = vadd.f32 0.0, %v640
    %642 = vdwg.mxu0
    %v645 = vunpack.c.l.b16 %v472
    %v646 = vunpack.c.l.b16 %v473
    %v647 = vpack.c.b16 %v646, %v645
    %v650 = vsel %vm325, %v471, 0
    %652 = vmatpush.bf16.msra.mxu0 0
    %653 = vmatpush.bf16.msra.mxu0 0
    %654 = vmatpush.bf16.msra.mxu0 0
    %655 = vmatpush.bf16.msra.mxu0 0
    %656 = vmatpush.bf16.msra.mxu0 0
    %657 = vmatpush.bf16.msra.mxu0 0
    %658 = vmatpush.bf16.msra.mxu0 0
    %659 = vmatpush.bf16.msra.mxu0 %v647
    %660 = vmatmul.bf16.gmra.mxu0 %v650
    %v661 = vpop.f32.mrf.mxu0
    %v662 = vadd.f32 %v639, %v661
    %v663 = vpop.f32.mrf.mxu0
    %v664 = vadd.f32 %v641, %v663
    %665 = vdwg.mxu0
    %v666 = vld [vmem:[#allocation4 + $0x1] sm:$0x1]
    %v667 = vperm.slane %v666, 0
    %v668 = vadd.f32 %v662, %v667
    %v669 = vadd.f32 %v664, %v667
    %v670 = vadd.f32 %v668, %v276
    %v671 = vadd.f32 %v669, %v277
    %v672 = vld [vmem:[#allocation4 + $0x2] sm:$0x1]
    %v673 = vld [vmem:[#allocation4 + $0x3] sm:$0x1]
    %v674 = vsel %vm220, %v670, 0.0
    %675 = vadd.xlane.f32.xlu0 %v674
    %v676 = vpop.xlane.xlu0 %675
    %v677 = vsel %vm220, %v671, 0.0
    %678 = vadd.xlane.f32.xlu0 %v677
    %v679 = vpop.xlane.xlu0 %678
    %v680 = vmul.f32 %v676, %v233
    %v681 = vmul.f32 %v679, %v233
    %v682 = vsub.f32 %v670, %v680
    %v683 = vsub.f32 %v671, %v681
    %v684 = vmul.f32 %v682, %v682
    %v685 = vmul.f32 %v683, %v683
    %v686 = vsel %vm220, %v684, 0.0
    %687 = vadd.xlane.f32.xlu0 %v686
    %v688 = vpop.xlane.xlu0 %687
    %v689 = vsel %vm220, %v685, 0.0
    %690 = vadd.xlane.f32.xlu0 %v689
    %v691 = vpop.xlane.xlu0 %690
    %v692 = vmul.f32 %v688, %v233
    %v693 = vmul.f32 %v691, %v233
    %v694 = vadd.f32 %v692, 1e-12
    %v695 = vadd.f32 %v693, 1e-12
    %v696 = vrsqrt.pop %v694
    %v697 = vmul.f32 %v696, %v694
    %v698 = vmul.f32 %v697, %v696
    %v699 = vmul.f32 0.5, %v698
    %v700 = vsub.f32 1.5, %v699
    %v701 = vmul.f32 %v696, %v700
    %vm702 = vweird.f32 %v694
    %vm703 = vweird.f32 %v696
    %vm704 = vmor %vm702, %vm703
    %v705 = vsel %vm704, %v696, %v701
    %v706 = vrsqrt.pop %v695
    %v707 = vmul.f32 %v706, %v695
    %v708 = vmul.f32 %v707, %v706
    %v709 = vmul.f32 0.5, %v708
    %v710 = vsub.f32 1.5, %v709
    %v711 = vmul.f32 %v706, %v710
    %vm712 = vweird.f32 %v695
    %vm713 = vweird.f32 %v706
    %vm714 = vmor %vm712, %vm713
    %v715 = vsel %vm714, %v706, %v711
    %v716 = vmul.f32 %v682, %v705
    %v717 = vmul.f32 %v683, %v715
    %v718 = vperm.slane %v672, 0
    %v719 = vmul.f32 %v716, %v718
    %v720 = vmul.f32 %v717, %v718
    %v721 = vperm.slane %v673, 0
    %v722 = vadd.f32 %v719, %v721
    %v723 = vadd.f32 %v720, %v721
    %v724 = vpack.c.bf16 %v723, %v722
    %v725 = vld [vmem:[#allocation9] sm:$0xf]
    %v726 = vld [vmem:[#allocation9 + $0x4] sm:$0xf]
    %v727 = vld [vmem:[#allocation9 + $0x8] sm:$0xf]
    %v728 = vld [vmem:[#allocation9 + $0xc] sm:$0xf]
    %v729 = vld [vmem:[#allocation4 + $0x4] sm:$0x1]
    %v730 = vperm.slane %v729, 0
    %v735 = vunpack.c.l.b16 %v725
    %v736 = vunpack.c.l.b16 %v726
    %v737 = vunpack.c.l.b16 %v727
    %v738 = vunpack.c.l.b16 %v728
    %v739 = vpack.c.b16 %v736, %v735
    %v740 = vpack.c.b16 %v738, %v737
    %v744 = vsel %vm220, %v724, 0
    %746 = vmatpush.bf16.msra.mxu0 0
    %747 = vmatpush.bf16.msra.mxu0 0
    %748 = vmatpush.bf16.msra.mxu0 0
    %749 = vmatpush.bf16.msra.mxu0 0
    %750 = vmatpush.bf16.msra.mxu0 0
    %751 = vmatpush.bf16.msra.mxu0 0
    %752 = vmatpush.bf16.msra.mxu0 %v740
    %753 = vmatpush.bf16.msra.mxu0 %v739
    %754 = vmatmul.bf16.gmra.mxu0 %v744
    %v755 = vpop.f32.mrf.mxu0
    %v756 = vadd.f32 %v730, %v755
    %v757 = vpop.f32.mrf.mxu0
    %v758 = vadd.f32 %v730, %v757
    %759 = vdwg.mxu0
    %v760 = vmul.f32 %v756, 0.5
    %v761 = vmul.f32 %v758, 0.5
    %v762 = vmul.f32 %v756, 0.044715
    %v763 = vmul.f32 %v758, 0.044715
    %v764 = vmul.f32 %v762, %v756
    %v765 = vmul.f32 %v763, %v758
    %v766 = vmul.f32 %v764, %v756
    %v767 = vmul.f32 %v765, %v758
    %v768 = vadd.f32 %v756, %v766
    %v769 = vadd.f32 %v758, %v767
    %v770 = vmul.f32 %v768, 0.7978846
    %v771 = vmul.f32 %v769, 0.7978846
    %v772 = vtanh.pop %v770
    %v773 = vtanh.pop %v771
    %v774 = vadd.f32 %v772, 1.0
    %v775 = vadd.f32 %v773, 1.0
    %v776 = vmul.f32 %v760, %v774
    %v777 = vmul.f32 %v761, %v775
    %v778 = vpack.c.bf16 %v777, %v776
    %v779 = vld [vmem:[#allocation10] sm:$0xf]
    %v780 = vld [vmem:[#allocation10 + $0x4] sm:$0xf]
    %v781 = vld [vmem:[#allocation10 + $0x8] sm:$0xf]
    %v782 = vld [vmem:[#allocation10 + $0xc] sm:$0xf]
    %v783 = vld [vmem:[#allocation10 + $0x10] sm:$0xf]
    %v784 = vld [vmem:[#allocation10 + $0x14] sm:$0xf]
    %v785 = vld [vmem:[#allocation10 + $0x18] sm:$0xf]
    %v786 = vld [vmem:[#allocation10 + $0x1c] sm:$0xf]
    %v787 = vld [vmem:[#allocation4 + $0x5] sm:$0x1]
    %v788 = vperm.slane %v787, 0
    %v797 = vunpack.c.l.b16 %v779
    %v798 = vunpack.c.l.b16 %v780
    %v799 = vunpack.c.l.b16 %v781
    %v800 = vunpack.c.l.b16 %v782
    %v801 = vunpack.c.l.b16 %v783
    %v802 = vunpack.c.l.b16 %v784
    %v803 = vunpack.c.l.b16 %v785
    %v804 = vunpack.c.l.b16 %v786
    %v805 = vpack.c.b16 %v798, %v797
    %v806 = vpack.c.b16 %v800, %v799
    %v807 = vpack.c.b16 %v802, %v801
    %v808 = vpack.c.b16 %v804, %v803
    %vm813 = vcmask 523264
    %v815 = vsel %vm813, %v778, 0
    %817 = vmatpush.bf16.msra.mxu0 0
    %818 = vmatpush.bf16.msra.mxu0 0
    %819 = vmatpush.bf16.msra.mxu0 0
    %820 = vmatpush.bf16.msra.mxu0 0
    %821 = vmatpush.bf16.msra.mxu0 %v808
    %822 = vmatpush.bf16.msra.mxu0 %v807
    %823 = vmatpush.bf16.msra.mxu0 %v806
    %824 = vmatpush.bf16.msra.mxu0 %v805
    %825 = vmatmul.bf16.gmra.mxu0 %v815
    %v826 = vpop.f32.mrf.mxu0
    %v827 = vadd.f32 %v788, %v826
    %v828 = vpop.f32.mrf.mxu0
    %v829 = vadd.f32 %v788, %v828
    %830 = vdwg.mxu0
    %v831 = vadd.f32 %v827, %v722
    %v832 = vadd.f32 %v829, %v723
    %v833 = vld [vmem:[#allocation4 + $0x6] sm:$0x1]
    %v834 = vld [vmem:[#allocation4 + $0x7] sm:$0x1]
    %v835 = vsel %vm220, %v831, 0.0
    %836 = vadd.xlane.f32.xlu0 %v835
    %v837 = vpop.xlane.xlu0 %836
    %v838 = vsel %vm220, %v832, 0.0
    %839 = vadd.xlane.f32.xlu0 %v838
    %v840 = vpop.xlane.xlu0 %839
    %v841 = vmul.f32 %v837, %v233
    %v842 = vmul.f32 %v840, %v233
    %v843 = vsub.f32 %v831, %v841
    %v844 = vsub.f32 %v832, %v842
    %v845 = vmul.f32 %v843, %v843
    %v846 = vmul.f32 %v844, %v844
    %v847 = vsel %vm220, %v845, 0.0
    %848 = vadd.xlane.f32.xlu0 %v847
    %v849 = vpop.xlane.xlu0 %848
    %v850 = vsel %vm220, %v846, 0.0
    %851 = vadd.xlane.f32.xlu0 %v850
    %v852 = vpop.xlane.xlu0 %851
    %v853 = vmul.f32 %v849, %v233
    %v854 = vmul.f32 %v852, %v233
    %v855 = vadd.f32 %v853, 1e-12
    %v856 = vadd.f32 %v854, 1e-12
    %v857 = vrsqrt.pop %v855
    %v858 = vmul.f32 %v857, %v855
    %v859 = vmul.f32 %v858, %v857
    %v860 = vmul.f32 0.5, %v859
    %v861 = vsub.f32 1.5, %v860
    %v862 = vmul.f32 %v857, %v861
    %vm863 = vweird.f32 %v855
    %vm864 = vweird.f32 %v857
    %vm865 = vmor %vm863, %vm864
    %v866 = vsel %vm865, %v857, %v862
    %v867 = vrsqrt.pop %v856
    %v868 = vmul.f32 %v867, %v856
    %v869 = vmul.f32 %v868, %v867
    %v870 = vmul.f32 0.5, %v869
    %v871 = vsub.f32 1.5, %v870
    %v872 = vmul.f32 %v867, %v871
    %vm873 = vweird.f32 %v856
    %vm874 = vweird.f32 %v867
    %vm875 = vmor %vm873, %vm874
    %v876 = vsel %vm875, %v867, %v872
    %v877 = vmul.f32 %v843, %v866
    %v878 = vmul.f32 %v844, %v876
    %v879 = vperm.slane %v833, 0
    %v880 = vmul.f32 %v877, %v879
    %v881 = vmul.f32 %v878, %v879
    %v882 = vperm.slane %v834, 0
    %v883 = vadd.f32 %v880, %v882
    %v884 = vadd.f32 %v881, %v882
    %v885 = vpack.c.bf16 %v884, %v883
    %s886 = scalar_lea.vmem [#allocation6], 16
    %v887 = vld [vmem:[%s886] sm:$0xf]
    %v888 = vld [vmem:[%s886 + $0x4] sm:$0xf]
    %v889 = vld [vmem:[%s886 + $0x8] sm:$0xf]
    %v890 = vld [vmem:[%s886 + $0xc] sm:$0xf]
    %s891 = scalar_lea.vmem [#allocation4], 8
    %v892 = vld [vmem:[%s891] sm:$0x1]
    %v893 = vperm.slane %v892, 0
    %v898 = vunpack.c.l.b16 %v887
    %v899 = vunpack.c.l.b16 %v888
    %v900 = vunpack.c.l.b16 %v889
    %v901 = vunpack.c.l.b16 %v890
    %v902 = vpack.c.b16 %v899, %v898
    %v903 = vpack.c.b16 %v901, %v900
    %v907 = vsel %vm220, %v885, 0
    %909 = vmatpush.bf16.msra.mxu0 0
    %910 = vmatpush.bf16.msra.mxu0 0
    %911 = vmatpush.bf16.msra.mxu0 0
    %912 = vmatpush.bf16.msra.mxu0 0
    %913 = vmatpush.bf16.msra.mxu0 0
    %914 = vmatpush.bf16.msra.mxu0 0
    %915 = vmatpush.bf16.msra.mxu0 %v903
    %916 = vmatpush.bf16.msra.mxu0 %v902
    %917 = vmatmul.bf16.gmra.mxu0 %v907
    %v918 = vpop.f32.mrf.mxu0
    %v919 = vadd.f32 %v893, %v918
    %v920 = vpop.f32.mrf.mxu0
    %v921 = vadd.f32 %v893, %v920
    %922 = vdwg.mxu0
    %v923 = vpack.c.bf16 %v919, %v919
    %v924 = vpack.c.bf16 %v921, %v921
    %v926 = vunpack.c.l.b16 %v923
    %v927 = vpack.c.b16 %v926, %v926
    %928 = vrot.lane.b32.xlu0 %v927, 96
    %v929 = vpop.permute.xlu0 %928
    %v931 = vsel %vm325, %v923, 0
    %v934 = vsel %vm325, %v929, 0
    %936 = vmatpush.bf16.xpose.msra.mxu0 0
    %937 = vmatpush.bf16.xpose.msra.mxu0 0
    %938 = vmatpush.bf16.xpose.msra.mxu0 0
    %939 = vmatpush.bf16.xpose.msra.mxu0 0
    %940 = vmatpush.bf16.xpose.msra.mxu0 0
    %941 = vmatpush.bf16.xpose.msra.mxu0 0
    %942 = vmatpush.bf16.xpose.msra.mxu0 0
    %943 = vmatpush.bf16.xpose.msra.mxu0 %v934
    %944 = vmatmul.bf16.gmra.mxu0 %v931
    %v945 = vpop.f32.mrf.mxu0
    %v946 = vadd.f32 0.0, %v945
    %v947 = vpop.f32.mrf.mxu0
    %948 = vdwg.mxu0
    %v950 = vunpack.c.l.b16 %v924
    %v951 = vpack.c.b16 %v950, %v950
    %952 = vrot.lane.b32.xlu0 %v951, 96
    %v953 = vpop.permute.xlu0 %952
    %v955 = vsel %vm325, %v924, 0
    %v958 = vsel %vm325, %v953, 0
    %960 = vmatpush.bf16.xpose.msra.mxu0 0
    %961 = vmatpush.bf16.xpose.msra.mxu0 0
    %962 = vmatpush.bf16.xpose.msra.mxu0 0
    %963 = vmatpush.bf16.xpose.msra.mxu0 0
    %964 = vmatpush.bf16.xpose.msra.mxu0 0
    %965 = vmatpush.bf16.xpose.msra.mxu0 0
    %966 = vmatpush.bf16.xpose.msra.mxu0 0
    %967 = vmatpush.bf16.xpose.msra.mxu0 %v958
    %968 = vmatmul.bf16.gmra.mxu0 %v955
    %v969 = vpop.f32.mrf.mxu0
    %v970 = vadd.f32 0.0, %v969
    %v971 = vpop.f32.mrf.mxu0
    %972 = vdwg.mxu0
    %v973 = vmul.f32 %v946, 0.25
    %v974 = vmul.f32 %v970, 0.25
    %v975 = vadd.f32 %v973, %v371
    %v976 = vadd.f32 %v974, %v372
    %v977 = vsel %vm377, %v975, -inf
    %978 = vmax.xlane.f32.xlu0 %v977
    %v979 = vpop.xlane.xlu0 %978
    %v980 = vsel %vm377, %v976, -inf
    %981 = vmax.xlane.f32.xlu0 %v980
    %v982 = vpop.xlane.xlu0 %981
    %v983 = vsub.f32 %v975, %v979
    %v984 = vsub.f32 %v976, %v982
    %v985 = vmul.f32 %v983, 1.442695
    %v986 = vpow.pop %v985
    %v987 = vmul.f32 %v984, 1.442695
    %v988 = vpow.pop %v987
    %v989 = vsel %vm377, %v986, 0.0
    %990 = vadd.xlane.f32.xlu0 %v989
    %v991 = vpop.xlane.xlu0 %990
    %v992 = vsel %vm377, %v988, 0.0
    %993 = vadd.xlane.f32.xlu0 %v992
    %v994 = vpop.xlane.xlu0 %993
    %v995 = vrcp.pop %v991
    %v996 = vmul.f32 %v991, %v995
    %v997 = vsub.f32 1.0, %v996
    %v998 = vmul.f32 %v995, %v997
    %v999 = vadd.f32 %v995, %v998
    %vm1000 = vweird.f32 %v991
    %vm1001 = vweird.f32 %v995
    %vm1002 = vmor %vm1000, %vm1001
    %v1003 = vsel %vm1002, %v995, %v999
    %v1004 = vand.u32 2147483647, %v991
    %vm1005 = vcmp.eq.f32.partialorder %v1004, 8.507059e+37
    %v1006 = vand.u32 %v991, 2147483648
    %v1007 = vor.u32 1.1754944e-38, %v1006
    %v1008 = vsel %vm1005, %v1007, %v1003
    %v1009 = vmul.f32 %v986, %v1008
    %v1010 = vrcp.pop %v994
    %v1011 = vmul.f32 %v994, %v1010
    %v1012 = vsub.f32 1.0, %v1011
    %v1013 = vmul.f32 %v1010, %v1012
    %v1014 = vadd.f32 %v1010, %v1013
    %vm1015 = vweird.f32 %v994
    %vm1016 = vweird.f32 %v1010
    %vm1017 = vmor %vm1015, %vm1016
    %v1018 = vsel %vm1017, %v1010, %v1014
    %v1019 = vand.u32 2147483647, %v994
    %vm1020 = vcmp.eq.f32.partialorder %v1019, 8.507059e+37
    %v1021 = vand.u32 %v994, 2147483648
    %v1022 = vor.u32 1.1754944e-38, %v1021
    %v1023 = vsel %vm1020, %v1022, %v1018
    %v1024 = vmul.f32 %v988, %v1023
    %v1025 = vpack.c.bf16 %v1009, %v1009
    %v1026 = vpack.c.bf16 %v1024, %v1024
    %1027 = vrot.lane.b32.xlu0 %v927, 64
    %v1028 = vpop.permute.xlu0 %1027
    %v1030 = vsel %vm377, %v1025, 0
    %v1033 = vsel %vm433, %v1028, 0
    %1035 = vmatpush.bf16.msra.mxu0 0
    %1036 = vmatpush.bf16.msra.mxu0 0
    %1037 = vmatpush.bf16.msra.mxu0 0
    %1038 = vmatpush.bf16.msra.mxu0 0
    %1039 = vmatpush.bf16.msra.mxu0 0
    %1040 = vmatpush.bf16.msra.mxu0 0
    %1041 = vmatpush.bf16.msra.mxu0 0
    %1042 = vmatpush.bf16.msra.mxu0 %v1033
    %1043 = vmatmul.bf16.gmra.mxu0 %v1030
    %v1044 = vpop.f32.mrf.mxu0
    %v1045 = vadd.f32 0.0, %v1044
    %v1046 = vpop.f32.mrf.mxu0
    %1047 = vdwg.mxu0
    %1048 = vrot.lane.b32.xlu0 %v951, 64
    %v1049 = vpop.permute.xlu0 %1048
    %v1051 = vsel %vm377, %v1026, 0
    %v1054 = vsel %vm433, %v1049, 0
    %1056 = vmatpush.bf16.msra.mxu0 0
    %1057 = vmatpush.bf16.msra.mxu0 0
    %1058 = vmatpush.bf16.msra.mxu0 0
    %1059 = vmatpush.bf16.msra.mxu0 0
    %1060 = vmatpush.bf16.msra.mxu0 0
    %1061 = vmatpush.bf16.msra.mxu0 0
    %1062 = vmatpush.bf16.msra.mxu0 0
    %1063 = vmatpush.bf16.msra.mxu0 %v1054
    %1064 = vmatmul.bf16.gmra.mxu0 %v1051
    %v1065 = vpop.f32.mrf.mxu0
    %v1066 = vadd.f32 0.0, %v1065
    %v1067 = vpop.f32.mrf.mxu0
    %1068 = vdwg.mxu0
    %v1069 = vpack.c.bf16 %v1066, %v1045
    %s1070 = scalar_lea.vmem [#allocation7], 16
    %v1071 = vld [vmem:[%s1070] sm:$0xf]
    %v1072 = vld [vmem:[%s1070 + $0x4] sm:$0xf]
    %1073 = vrot.lane.b32.xlu0 %v927, 112
    %v1074 = vpop.permute.xlu0 %1073
    %1075 = vrot.lane.b32.xlu0 %v927, 80
    %v1076 = vpop.permute.xlu0 %1075
    %v1078 = vsel %vm325, %v1074, 0
    %v1081 = vsel %vm325, %v1076, 0
    %1083 = vmatpush.bf16.xpose.msra.mxu0 0
    %1084 = vmatpush.bf16.xpose.msra.mxu0 0
    %1085 = vmatpush.bf16.xpose.msra.mxu0 0
    %1086 = vmatpush.bf16.xpose.msra.mxu0 0
    %1087 = vmatpush.bf16.xpose.msra.mxu0 0
    %1088 = vmatpush.bf16.xpose.msra.mxu0 0
    %1089 = vmatpush.bf16.xpose.msra.mxu0 0
    %1090 = vmatpush.bf16.xpose.msra.mxu0 %v1081
    %1091 = vmatmul.bf16.gmra.mxu0 %v1078
    %v1092 = vpop.f32.mrf.mxu0
    %v1093 = vadd.f32 0.0, %v1092
    %v1094 = vpop.f32.mrf.mxu0
    %1095 = vdwg.mxu0
    %1096 = vrot.lane.b32.xlu0 %v951, 112
    %v1097 = vpop.permute.xlu0 %1096
    %1098 = vrot.lane.b32.xlu0 %v951, 80
    %v1099 = vpop.permute.xlu0 %1098
    %v1101 = vsel %vm325, %v1097, 0
    %v1104 = vsel %vm325, %v1099, 0
    %1106 = vmatpush.bf16.xpose.msra.mxu0 0
    %1107 = vmatpush.bf16.xpose.msra.mxu0 0
    %1108 = vmatpush.bf16.xpose.msra.mxu0 0
    %1109 = vmatpush.bf16.xpose.msra.mxu0 0
    %1110 = vmatpush.bf16.xpose.msra.mxu0 0
    %1111 = vmatpush.bf16.xpose.msra.mxu0 0
    %1112 = vmatpush.bf16.xpose.msra.mxu0 0
    %1113 = vmatpush.bf16.xpose.msra.mxu0 %v1104
    %1114 = vmatmul.bf16.gmra.mxu0 %v1101
    %v1115 = vpop.f32.mrf.mxu0
    %v1116 = vadd.f32 0.0, %v1115
    %v1117 = vpop.f32.mrf.mxu0
    %1118 = vdwg.mxu0
    %v1119 = vmul.f32 %v1093, 0.25
    %v1120 = vmul.f32 %v1116, 0.25
    %v1121 = vadd.f32 %v1119, %v371
    %v1122 = vadd.f32 %v1120, %v372
    %v1123 = vsel %vm377, %v1121, -inf
    %1124 = vmax.xlane.f32.xlu0 %v1123
    %v1125 = vpop.xlane.xlu0 %1124
    %v1126 = vsel %vm377, %v1122, -inf
    %1127 = vmax.xlane.f32.xlu0 %v1126
    %v1128 = vpop.xlane.xlu0 %1127
    %v1129 = vsub.f32 %v1121, %v1125
    %v1130 = vsub.f32 %v1122, %v1128
    %v1131 = vmul.f32 %v1129, 1.442695
    %v1132 = vpow.pop %v1131
    %v1133 = vmul.f32 %v1130, 1.442695
    %v1134 = vpow.pop %v1133
    %v1135 = vsel %vm377, %v1132, 0.0
    %1136 = vadd.xlane.f32.xlu0 %v1135
    %v1137 = vpop.xlane.xlu0 %1136
    %v1138 = vsel %vm377, %v1134, 0.0
    %1139 = vadd.xlane.f32.xlu0 %v1138
    %v1140 = vpop.xlane.xlu0 %1139
    %v1141 = vrcp.pop %v1137
    %v1142 = vmul.f32 %v1137, %v1141
    %v1143 = vsub.f32 1.0, %v1142
    %v1144 = vmul.f32 %v1141, %v1143
    %v1145 = vadd.f32 %v1141, %v1144
    %vm1146 = vweird.f32 %v1137
    %vm1147 = vweird.f32 %v1141
    %vm1148 = vmor %vm1146, %vm1147
    %v1149 = vsel %vm1148, %v1141, %v1145
    %v1150 = vand.u32 2147483647, %v1137
    %vm1151 = vcmp.eq.f32.partialorder %v1150, 8.507059e+37
    %v1152 = vand.u32 %v1137, 2147483648
    %v1153 = vor.u32 1.1754944e-38, %v1152
    %v1154 = vsel %vm1151, %v1153, %v1149
    %v1155 = vmul.f32 %v1132, %v1154
    %v1156 = vrcp.pop %v1140
    %v1157 = vmul.f32 %v1140, %v1156
    %v1158 = vsub.f32 1.0, %v1157
    %v1159 = vmul.f32 %v1156, %v1158
    %v1160 = vadd.f32 %v1156, %v1159
    %vm1161 = vweird.f32 %v1140
    %vm1162 = vweird.f32 %v1156
    %vm1163 = vmor %vm1161, %vm1162
    %v1164 = vsel %vm1163, %v1156, %v1160
    %v1165 = vand.u32 2147483647, %v1140
    %vm1166 = vcmp.eq.f32.partialorder %v1165, 8.507059e+37
    %v1167 = vand.u32 %v1140, 2147483648
    %v1168 = vor.u32 1.1754944e-38, %v1167
    %v1169 = vsel %vm1166, %v1168, %v1164
    %v1170 = vmul.f32 %v1134, %v1169
    %v1171 = vpack.c.bf16 %v1155, %v1155
    %v1172 = vpack.c.bf16 %v1170, %v1170
    %1173 = vrot.lane.b32.xlu0 %v927, 48
    %v1174 = vpop.permute.xlu0 %1173
    %v1176 = vsel %vm377, %v1171, 0
    %v1179 = vsel %vm433, %v1174, 0
    %1181 = vmatpush.bf16.msra.mxu0 0
    %1182 = vmatpush.bf16.msra.mxu0 0
    %1183 = vmatpush.bf16.msra.mxu0 0
    %1184 = vmatpush.bf16.msra.mxu0 0
    %1185 = vmatpush.bf16.msra.mxu0 0
    %1186 = vmatpush.bf16.msra.mxu0 0
    %1187 = vmatpush.bf16.msra.mxu0 0
    %1188 = vmatpush.bf16.msra.mxu0 %v1179
    %1189 = vmatmul.bf16.gmra.mxu0 %v1176
    %v1190 = vpop.f32.mrf.mxu0
    %v1191 = vadd.f32 0.0, %v1190
    %v1192 = vpop.f32.mrf.mxu0
    %1193 = vdwg.mxu0
    %1194 = vrot.lane.b32.xlu0 %v951, 48
    %v1195 = vpop.permute.xlu0 %1194
    %v1197 = vsel %vm377, %v1172, 0
    %v1200 = vsel %vm433, %v1195, 0
    %1202 = vmatpush.bf16.msra.mxu0 0
    %1203 = vmatpush.bf16.msra.mxu0 0
    %1204 = vmatpush.bf16.msra.mxu0 0
    %1205 = vmatpush.bf16.msra.mxu0 0
    %1206 = vmatpush.bf16.msra.mxu0 0
    %1207 = vmatpush.bf16.msra.mxu0 0
    %1208 = vmatpush.bf16.msra.mxu0 0
    %1209 = vmatpush.bf16.msra.mxu0 %v1200
    %1210 = vmatmul.bf16.gmra.mxu0 %v1197
    %v1211 = vpop.f32.mrf.mxu0
    %v1212 = vadd.f32 0.0, %v1211
    %v1213 = vpop.f32.mrf.mxu0
    %1214 = vdwg.mxu0
    %v1215 = vpack.c.bf16 %v1212, %v1191
    %s1216 = scalar_lea.vmem [#allocation7], 24
    %v1217 = vld [vmem:[%s1216] sm:$0xf]
    %v1218 = vld [vmem:[%s1216 + $0x4] sm:$0xf]
    %v1221 = vunpack.c.l.b16 %v1217
    %v1222 = vunpack.c.l.b16 %v1218
    %v1223 = vpack.c.b16 %v1222, %v1221
    %v1226 = vsel %vm325, %v1215, 0
    %1228 = vmatpush.bf16.msra.mxu0 0
    %1229 = vmatpush.bf16.msra.mxu0 0
    %1230 = vmatpush.bf16.msra.mxu0 0
    %1231 = vmatpush.bf16.msra.mxu0 0
    %1232 = vmatpush.bf16.msra.mxu0 0
    %1233 = vmatpush.bf16.msra.mxu0 0
    %1234 = vmatpush.bf16.msra.mxu0 0
    %1235 = vmatpush.bf16.msra.mxu0 %v1223
    %1236 = vmatmul.bf16.gmra.mxu0 %v1226
    %v1237 = vpop.f32.mrf.mxu0
    %v1238 = vadd.f32 0.0, %v1237
    %v1239 = vpop.f32.mrf.mxu0
    %v1240 = vadd.f32 0.0, %v1239
    %1241 = vdwg.mxu0
    %v1244 = vunpack.c.l.b16 %v1071
    %v1245 = vunpack.c.l.b16 %v1072
    %v1246 = vpack.c.b16 %v1245, %v1244
    %v1249 = vsel %vm325, %v1069, 0
    %1251 = vmatpush.bf16.msra.mxu0 0
    %1252 = vmatpush.bf16.msra.mxu0 0
    %1253 = vmatpush.bf16.msra.mxu0 0
    %1254 = vmatpush.bf16.msra.mxu0 0
    %1255 = vmatpush.bf16.msra.mxu0 0
    %1256 = vmatpush.bf16.msra.mxu0 0
    %1257 = vmatpush.bf16.msra.mxu0 0
    %1258 = vmatpush.bf16.msra.mxu0 %v1246
    %1259 = vmatmul.bf16.gmra.mxu0 %v1249
    %v1260 = vpop.f32.mrf.mxu0
    %v1261 = vadd.f32 %v1238, %v1260
    %v1262 = vpop.f32.mrf.mxu0
    %v1263 = vadd.f32 %v1240, %v1262
    %1264 = vdwg.mxu0
    %v1265 = vld [vmem:[%s891 + $0x1] sm:$0x1]
    %v1266 = vperm.slane %v1265, 0
    %v1267 = vadd.f32 %v1261, %v1266
    %v1268 = vadd.f32 %v1263, %v1266
    %v1269 = vadd.f32 %v1267, %v883
    %v1270 = vadd.f32 %v1268, %v884
    %v1271 = vld [vmem:[%s891 + $0x2] sm:$0x1]
    %v1272 = vld [vmem:[%s891 + $0x3] sm:$0x1]
    %v1273 = vsel %vm220, %v1269, 0.0
    %1274 = vadd.xlane.f32.xlu0 %v1273
    %v1275 = vpop.xlane.xlu0 %1274
    %v1276 = vsel %vm220, %v1270, 0.0
    %1277 = vadd.xlane.f32.xlu0 %v1276
    %v1278 = vpop.xlane.xlu0 %1277
    %v1279 = vmul.f32 %v1275, %v233
    %v1280 = vmul.f32 %v1278, %v233
    %v1281 = vsub.f32 %v1269, %v1279
    %v1282 = vsub.f32 %v1270, %v1280
    %v1283 = vmul.f32 %v1281, %v1281
    %v1284 = vmul.f32 %v1282, %v1282
    %v1285 = vsel %vm220, %v1283, 0.0
    %1286 = vadd.xlane.f32.xlu0 %v1285
    %v1287 = vpop.xlane.xlu0 %1286
    %v1288 = vsel %vm220, %v1284, 0.0
    %1289 = vadd.xlane.f32.xlu0 %v1288
    %v1290 = vpop.xlane.xlu0 %1289
    %v1291 = vmul.f32 %v1287, %v233
    %v1292 = vmul.f32 %v1290, %v233
    %v1293 = vadd.f32 %v1291, 1e-12
    %v1294 = vadd.f32 %v1292, 1e-12
    %v1295 = vrsqrt.pop %v1293
    %v1296 = vmul.f32 %v1295, %v1293
    %v1297 = vmul.f32 %v1296, %v1295
    %v1298 = vmul.f32 0.5, %v1297
    %v1299 = vsub.f32 1.5, %v1298
    %v1300 = vmul.f32 %v1295, %v1299
    %vm1301 = vweird.f32 %v1293
    %vm1302 = vweird.f32 %v1295
    %vm1303 = vmor %vm1301, %vm1302
    %v1304 = vsel %vm1303, %v1295, %v1300
    %v1305 = vrsqrt.pop %v1294
    %v1306 = vmul.f32 %v1305, %v1294
    %v1307 = vmul.f32 %v1306, %v1305
    %v1308 = vmul.f32 0.5, %v1307
    %v1309 = vsub.f32 1.5, %v1308
    %v1310 = vmul.f32 %v1305, %v1309
    %vm1311 = vweird.f32 %v1294
    %vm1312 = vweird.f32 %v1305
    %vm1313 = vmor %vm1311, %vm1312
    %v1314 = vsel %vm1313, %v1305, %v1310
    %v1315 = vmul.f32 %v1281, %v1304
    %v1316 = vmul.f32 %v1282, %v1314
    %v1317 = vperm.slane %v1271, 0
    %v1318 = vmul.f32 %v1315, %v1317
    %v1319 = vmul.f32 %v1316, %v1317
    %v1320 = vperm.slane %v1272, 0
    %v1321 = vadd.f32 %v1318, %v1320
    %v1322 = vadd.f32 %v1319, %v1320
    %v1323 = vpack.c.bf16 %v1322, %v1321
    %s1324 = scalar_lea.vmem [#allocation9], 16
    %v1325 = vld [vmem:[%s1324] sm:$0xf]
    %v1326 = vld [vmem:[%s1324 + $0x4] sm:$0xf]
    %v1327 = vld [vmem:[%s1324 + $0x8] sm:$0xf]
    %v1328 = vld [vmem:[%s1324 + $0xc] sm:$0xf]
    %v1329 = vld [vmem:[%s891 + $0x4] sm:$0x1]
    %v1330 = vperm.slane %v1329, 0
    %v1335 = vunpack.c.l.b16 %v1325
    %v1336 = vunpack.c.l.b16 %v1326
    %v1337 = vunpack.c.l.b16 %v1327
    %v1338 = vunpack.c.l.b16 %v1328
    %v1339 = vpack.c.b16 %v1336, %v1335
    %v1340 = vpack.c.b16 %v1338, %v1337
    %v1344 = vsel %vm220, %v1323, 0
    %1346 = vmatpush.bf16.msra.mxu0 0
    %1347 = vmatpush.bf16.msra.mxu0 0
    %1348 = vmatpush.bf16.msra.mxu0 0
    %1349 = vmatpush.bf16.msra.mxu0 0
    %1350 = vmatpush.bf16.msra.mxu0 0
    %1351 = vmatpush.bf16.msra.mxu0 0
    %1352 = vmatpush.bf16.msra.mxu0 %v1340
    %1353 = vmatpush.bf16.msra.mxu0 %v1339
    %1354 = vmatmul.bf16.gmra.mxu0 %v1344
    %v1355 = vpop.f32.mrf.mxu0
    %v1356 = vadd.f32 %v1330, %v1355
    %v1357 = vpop.f32.mrf.mxu0
    %v1358 = vadd.f32 %v1330, %v1357
    %1359 = vdwg.mxu0
    %v1360 = vmul.f32 %v1356, 0.5
    %v1361 = vmul.f32 %v1358, 0.5
    %v1362 = vmul.f32 %v1356, 0.044715
    %v1363 = vmul.f32 %v1358, 0.044715
    %v1364 = vmul.f32 %v1362, %v1356
    %v1365 = vmul.f32 %v1363, %v1358
    %v1366 = vmul.f32 %v1364, %v1356
    %v1367 = vmul.f32 %v1365, %v1358
    %v1368 = vadd.f32 %v1356, %v1366
    %v1369 = vadd.f32 %v1358, %v1367
    %v1370 = vmul.f32 %v1368, 0.7978846
    %v1371 = vmul.f32 %v1369, 0.7978846
    %v1372 = vtanh.pop %v1370
    %v1373 = vtanh.pop %v1371
    %v1374 = vadd.f32 %v1372, 1.0
    %v1375 = vadd.f32 %v1373, 1.0
    %v1376 = vmul.f32 %v1360, %v1374
    %v1377 = vmul.f32 %v1361, %v1375
    %v1378 = vpack.c.bf16 %v1377, %v1376
    %s1379 = scalar_lea.vmem [#allocation10], 32
    %v1380 = vld [vmem:[%s1379] sm:$0xf]
    %v1381 = vld [vmem:[%s1379 + $0x4] sm:$0xf]
    %v1382 = vld [vmem:[%s1379 + $0x8] sm:$0xf]
    %v1383 = vld [vmem:[%s1379 + $0xc] sm:$0xf]
    %v1384 = vld [vmem:[%s1379 + $0x10] sm:$0xf]
    %v1385 = vld [vmem:[%s1379 + $0x14] sm:$0xf]
    %v1386 = vld [vmem:[%s1379 + $0x18] sm:$0xf]
    %v1387 = vld [vmem:[%s1379 + $0x1c] sm:$0xf]
    %v1388 = vld [vmem:[%s891 + $0x5] sm:$0x1]
    %v1389 = vperm.slane %v1388, 0
    %v1398 = vunpack.c.l.b16 %v1380
    %v1399 = vunpack.c.l.b16 %v1381
    %v1400 = vunpack.c.l.b16 %v1382
    %v1401 = vunpack.c.l.b16 %v1383
    %v1402 = vunpack.c.l.b16 %v1384
    %v1403 = vunpack.c.l.b16 %v1385
    %v1404 = vunpack.c.l.b16 %v1386
    %v1405 = vunpack.c.l.b16 %v1387
    %v1406 = vpack.c.b16 %v1399, %v1398
    %v1407 = vpack.c.b16 %v1401, %v1400
    %v1408 = vpack.c.b16 %v1403, %v1402
    %v1409 = vpack.c.b16 %v1405, %v1404
    %v1415 = vsel %vm813, %v1378, 0
    %1417 = vmatpush.bf16.msra.mxu0 0
    %1418 = vmatpush.bf16.msra.mxu0 0
    %1419 = vmatpush.bf16.msra.mxu0 0
    %1420 = vmatpush.bf16.msra.mxu0 0
    %1421 = vmatpush.bf16.msra.mxu0 %v1409
    %1422 = vmatpush.bf16.msra.mxu0 %v1408
    %1423 = vmatpush.bf16.msra.mxu0 %v1407
    %1424 = vmatpush.bf16.msra.mxu0 %v1406
    %1425 = vmatmul.bf16.gmra.mxu0 %v1415
    %v1426 = vpop.f32.mrf.mxu0
    %v1427 = vadd.f32 %v1389, %v1426
    %v1428 = vpop.f32.mrf.mxu0
    %v1429 = vadd.f32 %v1389, %v1428
    %1430 = vdwg.mxu0
    %v1431 = vadd.f32 %v1427, %v1321
    %v1432 = vadd.f32 %v1429, %v1322
    %v1433 = vld [vmem:[%s891 + $0x6] sm:$0x1]
    %v1434 = vld [vmem:[%s891 + $0x7] sm:$0x1]
    %v1435 = vsel %vm220, %v1431, 0.0
    %1436 = vadd.xlane.f32.xlu0 %v1435
    %v1437 = vpop.xlane.xlu0 %1436
    %v1438 = vsel %vm220, %v1432, 0.0
    %1439 = vadd.xlane.f32.xlu0 %v1438
    %v1440 = vpop.xlane.xlu0 %1439
    %v1441 = vmul.f32 %v1437, %v233
    %v1442 = vmul.f32 %v1440, %v233
    %v1443 = vsub.f32 %v1431, %v1441
    %v1444 = vsub.f32 %v1432, %v1442
    %v1445 = vmul.f32 %v1443, %v1443
    %v1446 = vmul.f32 %v1444, %v1444
    %v1447 = vsel %vm220, %v1445, 0.0
    %1448 = vadd.xlane.f32.xlu0 %v1447
    %v1449 = vpop.xlane.xlu0 %1448
    %v1450 = vsel %vm220, %v1446, 0.0
    %1451 = vadd.xlane.f32.xlu0 %v1450
    %v1452 = vpop.xlane.xlu0 %1451
    %v1453 = vmul.f32 %v1449, %v233
    %v1454 = vmul.f32 %v1452, %v233
    %v1455 = vadd.f32 %v1453, 1e-12
    %v1456 = vadd.f32 %v1454, 1e-12
    %v1457 = vrsqrt.pop %v1455
    %v1458 = vmul.f32 %v1457, %v1455
    %v1459 = vmul.f32 %v1458, %v1457
    %v1460 = vmul.f32 0.5, %v1459
    %v1461 = vsub.f32 1.5, %v1460
    %v1462 = vmul.f32 %v1457, %v1461
    %vm1463 = vweird.f32 %v1455
    %vm1464 = vweird.f32 %v1457
    %vm1465 = vmor %vm1463, %vm1464
    %v1466 = vsel %vm1465, %v1457, %v1462
    %v1467 = vrsqrt.pop %v1456
    %v1468 = vmul.f32 %v1467, %v1456
    %v1469 = vmul.f32 %v1468, %v1467
    %v1470 = vmul.f32 0.5, %v1469
    %v1471 = vsub.f32 1.5, %v1470
    %v1472 = vmul.f32 %v1467, %v1471
    %vm1473 = vweird.f32 %v1456
    %vm1474 = vweird.f32 %v1467
    %vm1475 = vmor %vm1473, %vm1474
    %v1476 = vsel %vm1475, %v1467, %v1472
    %v1477 = vmul.f32 %v1443, %v1466
    %v1478 = vmul.f32 %v1444, %v1476
    %v1479 = vperm.slane %v1433, 0
    %v1480 = vmul.f32 %v1477, %v1479
    %v1481 = vmul.f32 %v1478, %v1479
    %v1482 = vperm.slane %v1434, 0
    %v1483 = vadd.f32 %v1480, %v1482
    %v1484 = vadd.f32 %v1481, %v1482
    %v1485 = vld [vmem:[%s217 + $0x2] sm:$0x1]
    %v1486 = vld [vmem:[%s217 + $0x3] sm:$0x1]
    %v1487 = vperm.slane %v1485, 0
    %v1488 = vmul.f32 %v1483, %v1487
    %v1489 = vmul.f32 %v1484, %v1487
    %v1492 = vrot.slane %v1489, 7
    %vm1493 = vcmask 1041409
    %v1494 = vsel %vm1493, %v1492, %v1488
    %vm1496 = vcmask 254976
    %v1497 = vsel %vm1496, %v1494, 0.0
    %1498 = vadd.xlane.f32.xlu0 %v1497
    %v1499 = vpop.xlane.xlu0 %1498
    %v1500 = vperm.slane %v1486, 0
    %v1501 = vadd.f32 %v1499, %v1500
    %v1502 = vsub.f32 0.0, %v1501
    %v1503 = vmul.f32 %v1502, 1.442695
    %v1504 = vpow.pop %v1503
    %v1505 = vadd.f32 %v1504, 1.0
    %v1506 = vrcp.pop %v1505
    %v1507 = vmul.f32 %v1505, %v1506
    %v1508 = vsub.f32 1.0, %v1507
    %v1509 = vmul.f32 %v1506, %v1508
    %v1510 = vadd.f32 %v1506, %v1509
    %vm1511 = vweird.f32 %v1505
    %vm1512 = vweird.f32 %v1506
    %vm1513 = vmor %vm1511, %vm1512
    %v1514 = vsel %vm1513, %v1506, %v1510
    %v1515 = vand.u32 2147483647, %v1505
    %vm1516 = vcmp.eq.f32.partialorder %v1515, 8.507059e+37
    %v1517 = vand.u32 %v1505, 2147483648
    %v1518 = vor.u32 1.1754944e-38, %v1517
    %v1519 = vsel %vm1516, %v1518, %v1514
    %v1520 = vmul.f32 1.0, %v1519
    %v1523 = vrot.slane %v1484, 7
    %v1524 = vsel %vm1493, %v1523, %v1483
    %1526 = vst.msk [vmem:[%s7] sm:$0x3] %vm1496, %v1524
    %1528 = vrot.lane.b32.xlu0 %v1501, 32
    %v1529 = vpop.permute.xlu0 %1528
    %vm1531 = vcmask 263424
    %1532 = vst.msk [vmem:[%s7] sm:$0x3] %vm1531, %v1529
    %1534 = vrot.lane.b32.xlu0 %v1520, 33
    %v1535 = vpop.permute.xlu0 %1534
    %vm1537 = vcmask 271624
    %1538 = vst.msk [vmem:[%s7] sm:$0x3] %vm1537, %v1535
    %vm1539 = vcmask 1041680
    %1540 = vst.msk [vmem:[%s7] sm:$0x3] %vm1539, 0.0
    // Predicated region
    $region54: #{_lambda_.1} parent=1 // pred_check
      _
    $region55: #{_lambda_.1} parent=1 // pred_check_branch
      %1542 = sbr.rel (0) target = $region57
    $region56: #{_lambda_.1} parent=1 // pred_region
      _
    $region57: #{_lambda_.1} parent=1 // pred_fallthru
      _
    // Predicated region
    $region58: #{_lambda_.1} parent=1 // pred_check
      _
    $region59: #{_lambda_.1} parent=1 // pred_check_branch
      %1544 = sbr.rel (0) target = $region61
    $region60: #{_lambda_.1} parent=1 // pred_region
      _
    $region61: #{_lambda_.1} parent=1 // pred_fallthru
      _
    %1545 = vsyncpa [#allocation3], 1
    %1546 = vsyncpa [#allocation5], 1
    %1547 = vsyncpa [#allocation8], 1
    %1548 = vsyncpa [#allocation11], 1

</llo_original>
